<compile_context>
chip_gen: v6e
topology: v6e:2x2x1
jax: 0.10.0
libtpu: 0.0.40
codegen_flags: <defaults>
</compile_context>

<pallas_src>
import math
import functools

import jax
import jax.numpy as jnp
from jax.experimental import pallas as pl
from jax.experimental.pallas import tpu as pltpu

# ---------------------------------------------------------------------------
# Model hyper-parameters (small, input_dim divisible by num_heads).
# ---------------------------------------------------------------------------
B = 2          # batch
T = 8          # sequence length
C = 32         # input_dim (embed dim)
H = 4          # num_heads
D = C // H     # head dim
BT = B * T     # flattened rows
EPS = 1e-5     # nn.LayerNorm default eps
P_DROP = 0.1   # dropout prob (identity in eval mode)
NEG_INF = -1e9


def mhsa_kernel(x_ref, pe_ref, gamma_ref, beta_ref,
                w_qkv_ref, b_qkv_ref, wo_ref, bo_ref,
                mask_ref, out_ref):
    """Whole problem in one step. x_ref/out_ref: (B*T, C)."""
    x = x_ref[...]                                           # (BT, C)

    # ---- LayerNorm over last dim (f32, VPU/XLU) ----
    mean = jnp.mean(x, axis=-1, keepdims=True)
    var = jnp.mean((x - mean) ** 2, axis=-1, keepdims=True)
    ln = (x - mean) * jax.lax.rsqrt(var + EPS) * gamma_ref[...] + beta_ref[...]

    # ---- Positional encoding (already tiled to (BT, C) in wrapper) ----
    h = ln + pe_ref[...]

    # ---- Fused QKV projection: one MXU push, 96-lane-wide output ----
    qkv = jnp.dot(h, w_qkv_ref[...],
                  preferred_element_type=jnp.float32) + b_qkv_ref[...]   # (BT, 3C)

    add_mask = mask_ref[...]                                 # (BT, BT) additive
    wo = wo_ref[...]                                         # (C, C)
    scale = 1.0 / math.sqrt(D)

    # Residual + output-projection bias up front; heads accumulate into it.
    acc = x + bo_ref[...]                                    # (BT, C)

    # ---- Per-head attention; head concat folded into Wo row-slice accum ----
    for hd in range(H):
        lo = hd * D
        qh = qkv[:, lo:lo + D]                               # (BT, D)
        kh = qkv[:, C + lo:C + lo + D]                       # (BT, D)
        vh = qkv[:, 2 * C + lo:2 * C + lo + D]               # (BT, D)

        # Contract over D without materializing a transpose of kh.
        s = jax.lax.dot_general(
            qh, kh, (((1,), (1,)), ((), ())),
            preferred_element_type=jnp.float32) * scale      # (BT, BT)
        s = s + add_mask                                     # pad + cross-batch
        s = s - jnp.max(s, axis=-1, keepdims=True)
        p = jnp.exp(s)
        p = p * pl.reciprocal(jnp.sum(p, axis=-1, keepdims=True), approx=True)

        pv = jnp.dot(p, vh, preferred_element_type=jnp.float32)      # (BT, D)
        # Sublane-aligned slice of Wo; accumulate instead of lane-concat.
        acc = acc + jnp.dot(pv, wo[lo:lo + D, :],
                            preferred_element_type=jnp.float32)      # (BT, C)

    # TODO(synk): dropout is implemented as identity (eval-mode semantics).
    out_ref[...] = acc


def positional_encoding(seq_len: int, dim: int) -> jnp.ndarray:
    idx = 1.0 / (10000.0 ** (jnp.arange(0, dim, 2, dtype=jnp.float32) / dim))
    pos = jnp.arange(seq_len, dtype=jnp.float32).reshape(seq_len, 1)
    emb = jnp.zeros((seq_len, dim), dtype=jnp.float32)
    emb = emb.at[:, 0::2].set(jnp.sin(pos * idx))
    emb = emb.at[:, 1::2].set(jnp.cos(pos * idx))
    return emb


@jax.jit
def mhsa_forward(x, padding_mask, pe, params):
    """x: (B, T, C) f32; padding_mask: (B, T) bool (True = pad); pe: (T, C)."""
    b, t, c = x.shape
    bt = b * t
    x2d = x.reshape(bt, c)
    pe_flat = jnp.tile(pe, (b, 1))                           # (BT, C)

    # Combined additive mask: forbid cross-batch attention and padded keys.
    # NOTE: uses -1e9 (not -inf); a fully-padded row would yield a uniform
    # distribution instead of NaN, matching the JAX reference below.
    batch_id = jnp.repeat(jnp.arange(b), t)                  # (BT,)
    same_batch = batch_id[:, None] == batch_id[None, :]
    allow = same_batch & (~padding_mask.reshape(bt))[None, :]
    add_mask = jnp.where(allow, 0.0, NEG_INF).astype(jnp.float32)  # (BT, BT)

    # Fused QKV weight / bias (mirrors nn.MultiheadAttention's packed in_proj).
    w_qkv = jnp.concatenate(
        [params["wq_t"], params["wk_t"], params["wv_t"]], axis=1)     # (C, 3C)
    b_qkv = jnp.concatenate(
        [params["bq"], params["bk"], params["bv"]], axis=1)           # (1, 3C)

    vspec = lambda: pl.BlockSpec(memory_space=pltpu.MemorySpace.VMEM)

    out2d = pl.pallas_call(
        mhsa_kernel,
        out_shape=jax.ShapeDtypeStruct((bt, c), jnp.float32),
        in_specs=[vspec() for _ in range(9)],
        out_specs=vspec(),
    )(x2d, pe_flat,
      params["gamma"], params["beta"],
      w_qkv, b_qkv,
      params["wo_t"], params["bo"],
      add_mask)

    return out2d.reshape(b, t, c)


def reference_forward(x, padding_mask, pe, params):
    """Pure-JAX reference matching PyTorch semantics (eval mode)."""
    mean = jnp.mean(x, axis=-1, keepdims=True)
    var = jnp.mean((x - mean) ** 2, axis=-1, keepdims=True)
    ln = (x - mean) / jnp.sqrt(var + EPS) * params["gamma"] + params["beta"]
    h = ln + pe[None]
    q = h @ params["wq_t"] + params["bq"]
    k = h @ params["wk_t"] + params["bk"]
    v = h @ params["wv_t"] + params["bv"]
    qh = q.reshape(B, T, H, D).transpose(0, 2, 1, 3)
    kh = k.reshape(B, T, H, D).transpose(0, 2, 1, 3)
    vh = v.reshape(B, T, H, D).transpose(0, 2, 1, 3)
    s = jnp.einsum("bhqd,bhkd->bhqk", qh, kh) / math.sqrt(D)
    s = s + jnp.where(padding_mask, NEG_INF, 0.0)[:, None, None, :]
    p = jax.nn.softmax(s, axis=-1)
    a = jnp.einsum("bhqk,bhkd->bhqd", p, vh).transpose(0, 2, 1, 3).reshape(B, T, C)
    o = a @ params["wo_t"] + params["bo"]
    return o + x


def init_params(key):
    ks = jax.random.split(key, 8)
    s = 1.0 / math.sqrt(C)
    return {
        "gamma": jnp.ones((1, C), jnp.float32),
        "beta": jnp.zeros((1, C), jnp.float32),
        # Weights stored already transposed: y = h @ W^T  ->  h @ w*_t
        "wq_t": jax.random.uniform(ks[0], (C, C), jnp.float32, -s, s),
        "wk_t": jax.random.uniform(ks[1], (C, C), jnp.float32, -s, s),
        "wv_t": jax.random.uniform(ks[2], (C, C), jnp.float32, -s, s),
        "wo_t": jax.random.uniform(ks[3], (C, C), jnp.float32, -s, s),
        "bq": jax.random.uniform(ks[4], (1, C), jnp.float32, -s, s),
        "bk": jax.random.uniform(ks[5], (1, C), jnp.float32, -s, s),
        "bv": jax.random.uniform(ks[6], (1, C), jnp.float32, -s, s),
        "bo": jnp.zeros((1, C), jnp.float32),   # PyTorch out_proj bias init = 0
    }


if __name__ == "__main__":
    key = jax.random.PRNGKey(0)
    k_x, k_p = jax.random.split(key)

    x = jax.random.normal(k_x, (B, T, C), jnp.float32)
    # key_padding_mask: True marks padded (ignored) positions; pad tail of seq.
    lengths = jnp.array([T, T - 3])
    padding_mask = jnp.arange(T)[None, :] >= lengths[:, None]   # (B, T) bool

    params = init_params(k_p)
    pe = positional_encoding(T, C)   # computed once, passed in (not re-traced)

    out = mhsa_forward(x, padding_mask, pe, params)
    out = jax.block_until_ready(out)

    ref = reference_forward(x, padding_mask, pe, params)
    assert out.shape == (B, T, C)
    # Tolerance slightly loosened to absorb the EUP approximate reciprocal
    # used for the softmax normalizer (relative error ~1e-4).
    assert jnp.allclose(out, ref, atol=5e-3, rtol=5e-3), "mismatch vs reference"

    print("KERNEL_OK")
</pallas_src>

<mosaic_0001>
module attributes {stable_mosaic.version = 11 : i64} {
  func.func @mhsa_kernel(%arg0: memref<16x32xf32, #tpu.memory_space<vmem>>, %arg1: memref<16x32xf32, #tpu.memory_space<vmem>>, %arg2: memref<1x32xf32, #tpu.memory_space<vmem>>, %arg3: memref<1x32xf32, #tpu.memory_space<vmem>>, %arg4: memref<32x96xf32, #tpu.memory_space<vmem>>, %arg5: memref<1x96xf32, #tpu.memory_space<vmem>>, %arg6: memref<32x32xf32, #tpu.memory_space<vmem>>, %arg7: memref<1x32xf32, #tpu.memory_space<vmem>>, %arg8: memref<16x16xf32, #tpu.memory_space<vmem>>, %arg9: memref<16x32xf32, #tpu.memory_space<vmem>>) attributes {dimension_semantics = [], scalar_prefetch = 0 : i64, scratch_operands = 0 : i64, tpu.core_type = #tpu.core_type<tc>} {
    %c0 = arith.constant 0 : index
    %c0_0 = arith.constant 0 : index
    %0 = vector.load %arg0[%c0, %c0_0] : memref<16x32xf32, #tpu.memory_space<vmem>>, vector<16x32xf32>
    %cst = arith.constant dense<0.000000e+00> : vector<16xf32>
    %1 = vector.multi_reduction <add>, %0, %cst [1] : vector<16x32xf32> to vector<16xf32>
    %2 = vector.shape_cast %1 : vector<16xf32> to vector<16x1xf32>
    %cst_1 = arith.constant 3.200000e+01 : f32
    %3 = vector.broadcast %cst_1 : f32 to vector<16x1xf32>
    %4 = arith.divf %2, %3 : vector<16x1xf32>
    %5 = vector.broadcast %4 : vector<16x1xf32> to vector<16x32xf32>
    %6 = arith.subf %0, %5 : vector<16x32xf32>
    %7 = arith.mulf %6, %6 : vector<16x32xf32>
    %cst_2 = arith.constant dense<0.000000e+00> : vector<16xf32>
    %8 = vector.multi_reduction <add>, %7, %cst_2 [1] : vector<16x32xf32> to vector<16xf32>
    %9 = vector.shape_cast %8 : vector<16xf32> to vector<16x1xf32>
    %cst_3 = arith.constant 3.200000e+01 : f32
    %10 = vector.broadcast %cst_3 : f32 to vector<16x1xf32>
    %11 = arith.divf %9, %10 : vector<16x1xf32>
    %12 = vector.broadcast %4 : vector<16x1xf32> to vector<16x32xf32>
    %13 = arith.subf %0, %12 : vector<16x32xf32>
    %cst_4 = arith.constant 9.99999974E-6 : f32
    %14 = vector.broadcast %cst_4 : f32 to vector<16x1xf32>
    %15 = arith.addf %11, %14 : vector<16x1xf32>
    %16 = math.rsqrt %15 : vector<16x1xf32>
    %17 = vector.broadcast %16 : vector<16x1xf32> to vector<16x32xf32>
    %18 = arith.mulf %13, %17 : vector<16x32xf32>
    %c0_5 = arith.constant 0 : index
    %c0_6 = arith.constant 0 : index
    %19 = vector.load %arg2[%c0_5, %c0_6] : memref<1x32xf32, #tpu.memory_space<vmem>>, vector<1x32xf32>
    %20 = vector.broadcast %19 : vector<1x32xf32> to vector<16x32xf32>
    %21 = arith.mulf %18, %20 : vector<16x32xf32>
    %c0_7 = arith.constant 0 : index
    %c0_8 = arith.constant 0 : index
    %22 = vector.load %arg3[%c0_7, %c0_8] : memref<1x32xf32, #tpu.memory_space<vmem>>, vector<1x32xf32>
    %23 = vector.broadcast %22 : vector<1x32xf32> to vector<16x32xf32>
    %24 = arith.addf %21, %23 : vector<16x32xf32>
    %c0_9 = arith.constant 0 : index
    %c0_10 = arith.constant 0 : index
    %25 = vector.load %arg1[%c0_9, %c0_10] : memref<16x32xf32, #tpu.memory_space<vmem>>, vector<16x32xf32>
    %26 = arith.addf %24, %25 : vector<16x32xf32>
    %c0_11 = arith.constant 0 : index
    %c0_12 = arith.constant 0 : index
    %27 = vector.load %arg4[%c0_11, %c0_12] : memref<32x96xf32, #tpu.memory_space<vmem>>, vector<32x96xf32>
    %cst_13 = arith.constant dense<0.000000e+00> : vector<16x96xf32>
    %28 = tpu.matmul %26, %27, %cst_13 {dimension_numbers = #tpu.dot_dimension_numbers<[1], [0], [0], [1], [0, 0, 1, 1], [], []>} : vector<16x32xf32>, vector<32x96xf32>, vector<16x96xf32> -> vector<16x96xf32>
    %c0_14 = arith.constant 0 : index
    %c0_15 = arith.constant 0 : index
    %29 = vector.load %arg5[%c0_14, %c0_15] : memref<1x96xf32, #tpu.memory_space<vmem>>, vector<1x96xf32>
    %30 = vector.broadcast %29 : vector<1x96xf32> to vector<16x96xf32>
    %31 = arith.addf %28, %30 : vector<16x96xf32>
    %c0_16 = arith.constant 0 : index
    %c0_17 = arith.constant 0 : index
    %32 = vector.load %arg8[%c0_16, %c0_17] : memref<16x16xf32, #tpu.memory_space<vmem>>, vector<16x16xf32>
    %c0_18 = arith.constant 0 : index
    %c0_19 = arith.constant 0 : index
    %33 = vector.load %arg6[%c0_18, %c0_19] : memref<32x32xf32, #tpu.memory_space<vmem>>, vector<32x32xf32>
    %c0_20 = arith.constant 0 : index
    %c0_21 = arith.constant 0 : index
    %34 = vector.load %arg7[%c0_20, %c0_21] : memref<1x32xf32, #tpu.memory_space<vmem>>, vector<1x32xf32>
    %35 = vector.broadcast %34 : vector<1x32xf32> to vector<16x32xf32>
    %36 = arith.addf %0, %35 : vector<16x32xf32>
    %37 = vector.extract_strided_slice %31 {offsets = [0, 0], sizes = [16, 8], strides = [1, 1]} : vector<16x96xf32> to vector<16x8xf32>
    %38 = vector.extract_strided_slice %31 {offsets = [0, 32], sizes = [16, 8], strides = [1, 1]} : vector<16x96xf32> to vector<16x8xf32>
    %39 = vector.extract_strided_slice %31 {offsets = [0, 64], sizes = [16, 8], strides = [1, 1]} : vector<16x96xf32> to vector<16x8xf32>
    %cst_22 = arith.constant dense<0.000000e+00> : vector<16x16xf32>
    %40 = tpu.matmul %37, %38, %cst_22 {dimension_numbers = #tpu.dot_dimension_numbers<[1], [1], [0], [0], [0, 0, 1, 0], [], []>} : vector<16x8xf32>, vector<16x8xf32>, vector<16x16xf32> -> vector<16x16xf32>
    %cst_23 = arith.constant 0.353553385 : f32
    %41 = vector.broadcast %cst_23 : f32 to vector<16x16xf32>
    %42 = arith.mulf %40, %41 : vector<16x16xf32>
    %43 = arith.addf %42, %32 : vector<16x16xf32>
    %cst_24 = arith.constant dense<0xFF800000> : vector<16xf32>
    %44 = vector.multi_reduction <maximumf>, %43, %cst_24 [1] : vector<16x16xf32> to vector<16xf32>
    %45 = vector.shape_cast %44 : vector<16xf32> to vector<16x1xf32>
    %46 = vector.broadcast %45 : vector<16x1xf32> to vector<16x16xf32>
    %47 = arith.subf %43, %46 : vector<16x16xf32>
    %48 = math.exp %47 : vector<16x16xf32>
    %cst_25 = arith.constant dense<0.000000e+00> : vector<16xf32>
    %49 = vector.multi_reduction <add>, %48, %cst_25 [1] : vector<16x16xf32> to vector<16xf32>
    %50 = vector.shape_cast %49 : vector<16xf32> to vector<16x1xf32>
    %51 = tpu.reciprocal %50 {approx = true} : vector<16x1xf32> -> vector<16x1xf32>
    %52 = vector.broadcast %51 : vector<16x1xf32> to vector<16x16xf32>
    %53 = arith.mulf %48, %52 : vector<16x16xf32>
    %cst_26 = arith.constant dense<0.000000e+00> : vector<16x8xf32>
    %54 = tpu.matmul %53, %39, %cst_26 {dimension_numbers = #tpu.dot_dimension_numbers<[1], [0], [0], [1], [0, 0, 1, 1], [], []>} : vector<16x16xf32>, vector<16x8xf32>, vector<16x8xf32> -> vector<16x8xf32>
    %55 = vector.extract_strided_slice %33 {offsets = [0, 0], sizes = [8, 32], strides = [1, 1]} : vector<32x32xf32> to vector<8x32xf32>
    %cst_27 = arith.constant dense<0.000000e+00> : vector<16x32xf32>
    %56 = tpu.matmul %54, %55, %cst_27 {dimension_numbers = #tpu.dot_dimension_numbers<[1], [0], [0], [1], [0, 0, 1, 1], [], []>} : vector<16x8xf32>, vector<8x32xf32>, vector<16x32xf32> -> vector<16x32xf32>
    %57 = arith.addf %36, %56 : vector<16x32xf32>
    %58 = vector.extract_strided_slice %31 {offsets = [0, 8], sizes = [16, 8], strides = [1, 1]} : vector<16x96xf32> to vector<16x8xf32>
    %59 = vector.extract_strided_slice %31 {offsets = [0, 40], sizes = [16, 8], strides = [1, 1]} : vector<16x96xf32> to vector<16x8xf32>
    %60 = vector.extract_strided_slice %31 {offsets = [0, 72], sizes = [16, 8], strides = [1, 1]} : vector<16x96xf32> to vector<16x8xf32>
    %cst_28 = arith.constant dense<0.000000e+00> : vector<16x16xf32>
    %61 = tpu.matmul %58, %59, %cst_28 {dimension_numbers = #tpu.dot_dimension_numbers<[1], [1], [0], [0], [0, 0, 1, 0], [], []>} : vector<16x8xf32>, vector<16x8xf32>, vector<16x16xf32> -> vector<16x16xf32>
    %cst_29 = arith.constant 0.353553385 : f32
    %62 = vector.broadcast %cst_29 : f32 to vector<16x16xf32>
    %63 = arith.mulf %61, %62 : vector<16x16xf32>
    %64 = arith.addf %63, %32 : vector<16x16xf32>
    %cst_30 = arith.constant dense<0xFF800000> : vector<16xf32>
    %65 = vector.multi_reduction <maximumf>, %64, %cst_30 [1] : vector<16x16xf32> to vector<16xf32>
    %66 = vector.shape_cast %65 : vector<16xf32> to vector<16x1xf32>
    %67 = vector.broadcast %66 : vector<16x1xf32> to vector<16x16xf32>
    %68 = arith.subf %64, %67 : vector<16x16xf32>
    %69 = math.exp %68 : vector<16x16xf32>
    %cst_31 = arith.constant dense<0.000000e+00> : vector<16xf32>
    %70 = vector.multi_reduction <add>, %69, %cst_31 [1] : vector<16x16xf32> to vector<16xf32>
    %71 = vector.shape_cast %70 : vector<16xf32> to vector<16x1xf32>
    %72 = tpu.reciprocal %71 {approx = true} : vector<16x1xf32> -> vector<16x1xf32>
    %73 = vector.broadcast %72 : vector<16x1xf32> to vector<16x16xf32>
    %74 = arith.mulf %69, %73 : vector<16x16xf32>
    %cst_32 = arith.constant dense<0.000000e+00> : vector<16x8xf32>
    %75 = tpu.matmul %74, %60, %cst_32 {dimension_numbers = #tpu.dot_dimension_numbers<[1], [0], [0], [1], [0, 0, 1, 1], [], []>} : vector<16x16xf32>, vector<16x8xf32>, vector<16x8xf32> -> vector<16x8xf32>
    %76 = vector.extract_strided_slice %33 {offsets = [8, 0], sizes = [8, 32], strides = [1, 1]} : vector<32x32xf32> to vector<8x32xf32>
    %cst_33 = arith.constant dense<0.000000e+00> : vector<16x32xf32>
    %77 = tpu.matmul %75, %76, %cst_33 {dimension_numbers = #tpu.dot_dimension_numbers<[1], [0], [0], [1], [0, 0, 1, 1], [], []>} : vector<16x8xf32>, vector<8x32xf32>, vector<16x32xf32> -> vector<16x32xf32>
    %78 = arith.addf %57, %77 : vector<16x32xf32>
    %79 = vector.extract_strided_slice %31 {offsets = [0, 16], sizes = [16, 8], strides = [1, 1]} : vector<16x96xf32> to vector<16x8xf32>
    %80 = vector.extract_strided_slice %31 {offsets = [0, 48], sizes = [16, 8], strides = [1, 1]} : vector<16x96xf32> to vector<16x8xf32>
    %81 = vector.extract_strided_slice %31 {offsets = [0, 80], sizes = [16, 8], strides = [1, 1]} : vector<16x96xf32> to vector<16x8xf32>
    %cst_34 = arith.constant dense<0.000000e+00> : vector<16x16xf32>
    %82 = tpu.matmul %79, %80, %cst_34 {dimension_numbers = #tpu.dot_dimension_numbers<[1], [1], [0], [0], [0, 0, 1, 0], [], []>} : vector<16x8xf32>, vector<16x8xf32>, vector<16x16xf32> -> vector<16x16xf32>
    %cst_35 = arith.constant 0.353553385 : f32
    %83 = vector.broadcast %cst_35 : f32 to vector<16x16xf32>
    %84 = arith.mulf %82, %83 : vector<16x16xf32>
    %85 = arith.addf %84, %32 : vector<16x16xf32>
    %cst_36 = arith.constant dense<0xFF800000> : vector<16xf32>
    %86 = vector.multi_reduction <maximumf>, %85, %cst_36 [1] : vector<16x16xf32> to vector<16xf32>
    %87 = vector.shape_cast %86 : vector<16xf32> to vector<16x1xf32>
    %88 = vector.broadcast %87 : vector<16x1xf32> to vector<16x16xf32>
    %89 = arith.subf %85, %88 : vector<16x16xf32>
    %90 = math.exp %89 : vector<16x16xf32>
    %cst_37 = arith.constant dense<0.000000e+00> : vector<16xf32>
    %91 = vector.multi_reduction <add>, %90, %cst_37 [1] : vector<16x16xf32> to vector<16xf32>
    %92 = vector.shape_cast %91 : vector<16xf32> to vector<16x1xf32>
    %93 = tpu.reciprocal %92 {approx = true} : vector<16x1xf32> -> vector<16x1xf32>
    %94 = vector.broadcast %93 : vector<16x1xf32> to vector<16x16xf32>
    %95 = arith.mulf %90, %94 : vector<16x16xf32>
    %cst_38 = arith.constant dense<0.000000e+00> : vector<16x8xf32>
    %96 = tpu.matmul %95, %81, %cst_38 {dimension_numbers = #tpu.dot_dimension_numbers<[1], [0], [0], [1], [0, 0, 1, 1], [], []>} : vector<16x16xf32>, vector<16x8xf32>, vector<16x8xf32> -> vector<16x8xf32>
    %97 = vector.extract_strided_slice %33 {offsets = [16, 0], sizes = [8, 32], strides = [1, 1]} : vector<32x32xf32> to vector<8x32xf32>
    %cst_39 = arith.constant dense<0.000000e+00> : vector<16x32xf32>
    %98 = tpu.matmul %96, %97, %cst_39 {dimension_numbers = #tpu.dot_dimension_numbers<[1], [0], [0], [1], [0, 0, 1, 1], [], []>} : vector<16x8xf32>, vector<8x32xf32>, vector<16x32xf32> -> vector<16x32xf32>
    %99 = arith.addf %78, %98 : vector<16x32xf32>
    %100 = vector.extract_strided_slice %31 {offsets = [0, 24], sizes = [16, 8], strides = [1, 1]} : vector<16x96xf32> to vector<16x8xf32>
    %101 = vector.extract_strided_slice %31 {offsets = [0, 56], sizes = [16, 8], strides = [1, 1]} : vector<16x96xf32> to vector<16x8xf32>
    %102 = vector.extract_strided_slice %31 {offsets = [0, 88], sizes = [16, 8], strides = [1, 1]} : vector<16x96xf32> to vector<16x8xf32>
    %cst_40 = arith.constant dense<0.000000e+00> : vector<16x16xf32>
    %103 = tpu.matmul %100, %101, %cst_40 {dimension_numbers = #tpu.dot_dimension_numbers<[1], [1], [0], [0], [0, 0, 1, 0], [], []>} : vector<16x8xf32>, vector<16x8xf32>, vector<16x16xf32> -> vector<16x16xf32>
    %cst_41 = arith.constant 0.353553385 : f32
    %104 = vector.broadcast %cst_41 : f32 to vector<16x16xf32>
    %105 = arith.mulf %103, %104 : vector<16x16xf32>
    %106 = arith.addf %105, %32 : vector<16x16xf32>
    %cst_42 = arith.constant dense<0xFF800000> : vector<16xf32>
    %107 = vector.multi_reduction <maximumf>, %106, %cst_42 [1] : vector<16x16xf32> to vector<16xf32>
    %108 = vector.shape_cast %107 : vector<16xf32> to vector<16x1xf32>
    %109 = vector.broadcast %108 : vector<16x1xf32> to vector<16x16xf32>
    %110 = arith.subf %106, %109 : vector<16x16xf32>
    %111 = math.exp %110 : vector<16x16xf32>
    %cst_43 = arith.constant dense<0.000000e+00> : vector<16xf32>
    %112 = vector.multi_reduction <add>, %111, %cst_43 [1] : vector<16x16xf32> to vector<16xf32>
    %113 = vector.shape_cast %112 : vector<16xf32> to vector<16x1xf32>
    %114 = tpu.reciprocal %113 {approx = true} : vector<16x1xf32> -> vector<16x1xf32>
    %115 = vector.broadcast %114 : vector<16x1xf32> to vector<16x16xf32>
    %116 = arith.mulf %111, %115 : vector<16x16xf32>
    %cst_44 = arith.constant dense<0.000000e+00> : vector<16x8xf32>
    %117 = tpu.matmul %116, %102, %cst_44 {dimension_numbers = #tpu.dot_dimension_numbers<[1], [0], [0], [1], [0, 0, 1, 1], [], []>} : vector<16x16xf32>, vector<16x8xf32>, vector<16x8xf32> -> vector<16x8xf32>
    %118 = vector.extract_strided_slice %33 {offsets = [24, 0], sizes = [8, 32], strides = [1, 1]} : vector<32x32xf32> to vector<8x32xf32>
    %cst_45 = arith.constant dense<0.000000e+00> : vector<16x32xf32>
    %119 = tpu.matmul %117, %118, %cst_45 {dimension_numbers = #tpu.dot_dimension_numbers<[1], [0], [0], [1], [0, 0, 1, 1], [], []>} : vector<16x8xf32>, vector<8x32xf32>, vector<16x32xf32> -> vector<16x32xf32>
    %120 = arith.addf %99, %119 : vector<16x32xf32>
    %c0_46 = arith.constant 0 : index
    %c0_47 = arith.constant 0 : index
    %121 = vector.load %arg9[%c0_46, %c0_47] : memref<16x32xf32, #tpu.memory_space<vmem>>, vector<16x32xf32>
    tpu.vector_store %arg9[%c0_46, %c0_47], %120 {strides = array<i32>} : memref<16x32xf32, #tpu.memory_space<vmem>>, vector<16x32xf32>,
    return
  }
}

</mosaic_0001>

<llo_original>
// kernel: eq.8
$region0: #{eq.8}
  %s0 = inlined_call_operand.vmem [shape: s32[2,8], index: 0, kind: input, shape index: {}]
  %s1 = inlined_call_operand.vmem [shape: s32[16], index: 1, kind: output, shape index: {}]
  $region1: #{eq.8} parent=0
    #allocation0 [shape = 'u8[4096]{0}', space=vmem, size = 0x1000, scoped, tag = 'scoped mem for output reshape']
    #allocation1 [shape = 'u8[4096]{0}', space=vmem, size = 0x1000, scoped, tag = 'scoped mem for input reshape']
    %s3 = sshll.u32 1, 2
    %s4 = ssub.s32 %s3, 1
    %v5 = vld [vmem:[%s0] sm:%s4]
    %6 = vst [vmem:[#allocation1] sm:%s4] %v5
    %v7 = vld [vmem:[#allocation1] sm:$0x1]
    %vm8 = vcmask 64512
    %9 = vst.msk [vmem:[#allocation0] sm:$0x1] %vm8, %v7
    %s10 = scalar_lea.vmem [#allocation1], 1
    %v11 = vld [vmem:[%s10] sm:$0x1]
    %12 = vrot.lane.b32.xlu0 %v11, 8
    %v13 = vpop.permute.xlu0 %12
    %vm14 = vcmask 130112
    %15 = vst.msk [vmem:[#allocation0] sm:$0x1] %vm14, %v13
    %s17 = sshll.u32 1, 1
    %s18 = ssub.s32 %s17, 1
    %v20 = vld [vmem:[#allocation0] sm:%s18]
    %s21 = sshll.u32 1, 1
    %s22 = ssub.s32 %s21, 1
    %23 = vst [vmem:[%s1] sm:%s22] %v20

// kernel: mhsa_forward.1
$region0: #{mhsa_forward.1}
  #allocation0 [shape = 'u32[]', space=smem, size = 0x4, offset = 0x4, fixed_abs, tag = 'smem constant byte address 0x4 - core index']
  #allocation1 [shape = 'u32[144,128]{1,0:T(1,128)}', space=vmem, size = 0x12000, scoped, tag = 'internal scratch']
  %s0 = inlined_call_operand.vmem [shape: f32[16,32], index: 0, kind: input, shape index: {}]
  %s1 = inlined_call_operand.vmem [shape: f32[16,32], index: 1, kind: input, shape index: {}]
  %s2 = inlined_call_operand.vmem [shape: f32[1,32], index: 2, kind: input, shape index: {}]
  %s3 = inlined_call_operand.vmem [shape: f32[1,32], index: 3, kind: input, shape index: {}]
  %s4 = inlined_call_operand.vmem [shape: f32[32,96], index: 4, kind: input, shape index: {}]
  %s5 = inlined_call_operand.vmem [shape: f32[1,96], index: 5, kind: input, shape index: {}]
  %s6 = inlined_call_operand.vmem [shape: f32[32,32], index: 6, kind: input, shape index: {}]
  %s7 = inlined_call_operand.vmem [shape: f32[1,32], index: 7, kind: input, shape index: {}]
  %s8 = inlined_call_operand.vmem [shape: f32[16,16], index: 8, kind: input, shape index: {}]
  %s9 = inlined_call_operand.hbm [shape: f32[16,32], index: 9, kind: output, shape index: {}]
  %s10 = sld [smem:[#allocation0]]
  $region46: #{mhsa_forward.1} parent=0
    _
  %s12 = ssub.s32 1, %s10
  %s13 = scalar_select 0, %s12, %s10
  $region1: #{mhsa_forward.1} parent=0
    #allocation2 [shape = 'u8[8192]{0}', space=vmem, size = 0x2000, scoped, tag = 'output window, operand 0, single buffered']
    #allocation3 [shape = 's32[1]{0}', space=sflag, size = 0x4, scoped, tag = 'scoped memory for mhsa_forward.1']
    %14 = vsyncpa [#allocation3], 0
    // Predicated region
    $region2: #{mhsa_forward.1} parent=1 // pred_check
      _
    $region3: #{mhsa_forward.1} parent=1 // pred_check_branch
      %16 = sbr.rel (0) target = $region5
    $region4: #{mhsa_forward.1} parent=1 // pred_region
      _
    $region5: #{mhsa_forward.1} parent=1 // pred_fallthru
      _
    // Predicated region
    $region6: #{mhsa_forward.1} parent=1 // pred_check
      _
    $region7: #{mhsa_forward.1} parent=1 // pred_check_branch
      %18 = sbr.rel (0) target = $region9
    $region8: #{mhsa_forward.1} parent=1 // pred_region
      _
    $region9: #{mhsa_forward.1} parent=1 // pred_fallthru
      _
    // Predicated region
    $region10: #{mhsa_forward.1} parent=1 // pred_check
      _
    $region11: #{mhsa_forward.1} parent=1 // pred_check_branch
      %20 = sbr.rel (0) target = $region13
    $region12: #{mhsa_forward.1} parent=1 // pred_region
      _
    $region13: #{mhsa_forward.1} parent=1 // pred_fallthru
      _
    // Predicated region
    $region14: #{mhsa_forward.1} parent=1 // pred_check
      _
    $region15: #{mhsa_forward.1} parent=1 // pred_check_branch
      %22 = sbr.rel (0) target = $region17
    $region16: #{mhsa_forward.1} parent=1 // pred_region
      _
    $region17: #{mhsa_forward.1} parent=1 // pred_fallthru
      _
    // Predicated region
    $region18: #{mhsa_forward.1} parent=1 // pred_check
      _
    $region19: #{mhsa_forward.1} parent=1 // pred_check_branch
      %24 = sbr.rel (0) target = $region21
    $region20: #{mhsa_forward.1} parent=1 // pred_region
      _
    $region21: #{mhsa_forward.1} parent=1 // pred_fallthru
      _
    // Predicated region
    $region22: #{mhsa_forward.1} parent=1 // pred_check
      _
    $region23: #{mhsa_forward.1} parent=1 // pred_check_branch
      %26 = sbr.rel (0) target = $region25
    $region24: #{mhsa_forward.1} parent=1 // pred_region
      _
    $region25: #{mhsa_forward.1} parent=1 // pred_fallthru
      _
    // Predicated region
    $region26: #{mhsa_forward.1} parent=1 // pred_check
      _
    $region27: #{mhsa_forward.1} parent=1 // pred_check_branch
      %28 = sbr.rel (0) target = $region29
    $region28: #{mhsa_forward.1} parent=1 // pred_region
      _
    $region29: #{mhsa_forward.1} parent=1 // pred_fallthru
      _
    // Predicated region
    $region30: #{mhsa_forward.1} parent=1 // pred_check
      _
    $region31: #{mhsa_forward.1} parent=1 // pred_check_branch
      %30 = sbr.rel (0) target = $region33
    $region32: #{mhsa_forward.1} parent=1 // pred_region
      _
    $region33: #{mhsa_forward.1} parent=1 // pred_fallthru
      _
    // Predicated region
    $region34: #{mhsa_forward.1} parent=1 // pred_check
      _
    $region35: #{mhsa_forward.1} parent=1 // pred_check_branch
      %32 = sbr.rel (0) target = $region37
    $region36: #{mhsa_forward.1} parent=1 // pred_region
      _
    $region37: #{mhsa_forward.1} parent=1 // pred_fallthru
      _
    %v33 = vld [vmem:[%s0] sm:$0xff]
    %v34 = vld [vmem:[%s0 + $0x8] sm:$0xff]
    %vm35 = vcmask 261120
    %v36 = vsel %vm35, %v33, 0.0
    %37 = vadd.xlane.f32.xlu0 %v36
    %v38 = vpop.xlane.xlu0 %37
    %v39 = vsel %vm35, %v34, 0.0
    %40 = vadd.xlane.f32.xlu0 %v39
    %v41 = vpop.xlane.xlu0 %40
    %v42 = vrcp.pop 32.0
    %v43 = vmul.f32 %v38, %v42
    %v44 = vmul.f32 %v41, %v42
    %v45 = vsub.f32 %v33, %v43
    %v46 = vsub.f32 %v34, %v44
    %v47 = vmul.f32 %v45, %v45
    %v48 = vmul.f32 %v46, %v46
    %v49 = vsel %vm35, %v47, 0.0
    %50 = vadd.xlane.f32.xlu0 %v49
    %v51 = vpop.xlane.xlu0 %50
    %v52 = vsel %vm35, %v48, 0.0
    %53 = vadd.xlane.f32.xlu0 %v52
    %v54 = vpop.xlane.xlu0 %53
    %v55 = vmul.f32 %v51, %v42
    %v56 = vmul.f32 %v54, %v42
    %v57 = vadd.f32 %v55, 1e-05
    %v58 = vadd.f32 %v56, 1e-05
    %v59 = vrsqrt.pop %v57
    %v60 = vrsqrt.pop %v58
    %v61 = vmul.f32 %v45, %v59
    %v62 = vmul.f32 %v46, %v60
    %v63 = vld [vmem:[%s2] sm:$0x1]
    %v65 = vlaneseq
    %v66 = vshrl.u32 %v65, 7
    %v67 = vsub.s32 0, %v66
    %v68 = vrot.slane %v63, %v67
    %v70 = vmul.f32 %v61, %v68
    %v71 = vmul.f32 %v62, %v68
    %v72 = vld [vmem:[%s3] sm:$0x1]
    %v74 = vlaneseq
    %v75 = vshrl.u32 %v74, 7
    %v76 = vsub.s32 0, %v75
    %v77 = vrot.slane %v72, %v76
    %v79 = vadd.f32 %v70, %v77
    %v80 = vadd.f32 %v71, %v77
    %v81 = vld [vmem:[%s1] sm:$0xff]
    %v82 = vld [vmem:[%s1 + $0x8] sm:$0xff]
    %v83 = vadd.f32 %v79, %v81
    %v84 = vadd.f32 %v80, %v82
    %v85 = vld [vmem:[%s4] sm:$0xff]
    %v86 = vld [vmem:[%s4 + $0x8] sm:$0xff]
    %v87 = vld [vmem:[%s4 + $0x10] sm:$0xff]
    %v88 = vld [vmem:[%s4 + $0x18] sm:$0xff]
    %v89 = vld [vmem:[%s5] sm:$0x1]
    %v91 = vlaneseq
    %v92 = vshrl.u32 %v91, 7
    %v93 = vsub.s32 0, %v92
    %v94 = vrot.slane %v89, %v93
    %v97 = vsel %vm35, %v83, 0
    %v100 = vsel %vm35, %v84, 0
    %102 = vmatprep.subr.mxu0 0.0
    %103 = vmatpush1.msra.mxu0 0.0
    %104 = vmatprep.subr.mxu0 0.0
    %105 = vmatpush1.msra.mxu0 0.0
    %106 = vmatprep.subr.mxu0 0.0
    %107 = vmatpush1.msra.mxu0 0.0
    %108 = vmatprep.subr.mxu0 0.0
    %109 = vmatpush1.msra.mxu0 0.0
    %110 = vmatprep.subr.mxu0 0.0
    %111 = vmatpush1.msra.mxu0 0.0
    %112 = vmatprep.subr.mxu0 0.0
    %113 = vmatpush1.msra.mxu0 0.0
    %114 = vmatprep.subr.mxu0 0.0
    %115 = vmatpush1.msra.mxu0 0.0
    %116 = vmatprep.subr.mxu0 0.0
    %117 = vmatpush1.msra.mxu0 0.0
    %118 = vmatprep.subr.mxu0 0.0
    %119 = vmatpush1.msra.mxu0 0.0
    %120 = vmatprep.subr.mxu0 0.0
    %121 = vmatpush1.msra.mxu0 0.0
    %122 = vmatprep.subr.mxu0 0.0
    %123 = vmatpush1.msra.mxu0 0.0
    %124 = vmatprep.subr.mxu0 0.0
    %125 = vmatpush1.msra.mxu0 0.0
    %126 = vmatprep.subr.mxu0 0.0
    %127 = vmatpush1.msra.mxu0 %v88
    %128 = vmatprep.subr.mxu0 0.0
    %129 = vmatpush1.msra.mxu0 %v87
    %130 = vmatprep.subr.mxu0 0.0
    %131 = vmatpush1.msra.mxu0 %v86
    %132 = vmatprep.subr.mxu0 0.0
    %133 = vmatpush1.msra.mxu0 %v85
    %134 = vmatprep.subr.mxu0 0.0
    %135 = vmatpush2.msra.mxu0 0.0
    %136 = vmatprep.subr.mxu0 0.0
    %137 = vmatpush2.msra.mxu0 0.0
    %138 = vmatprep.subr.mxu0 0.0
    %139 = vmatpush2.msra.mxu0 0.0
    %140 = vmatprep.subr.mxu0 0.0
    %141 = vmatpush2.msra.mxu0 0.0
    %142 = vmatprep.subr.mxu0 0.0
    %143 = vmatpush2.msra.mxu0 0.0
    %144 = vmatprep.subr.mxu0 0.0
    %145 = vmatpush2.msra.mxu0 0.0
    %146 = vmatprep.subr.mxu0 0.0
    %147 = vmatpush2.msra.mxu0 0.0
    %148 = vmatprep.subr.mxu0 0.0
    %149 = vmatpush2.msra.mxu0 0.0
    %150 = vmatprep.subr.mxu0 0.0
    %151 = vmatpush2.msra.mxu0 0.0
    %152 = vmatprep.subr.mxu0 0.0
    %153 = vmatpush2.msra.mxu0 0.0
    %154 = vmatprep.subr.mxu0 0.0
    %155 = vmatpush2.msra.mxu0 0.0
    %156 = vmatprep.subr.mxu0 0.0
    %157 = vmatpush2.msra.mxu0 0.0
    %158 = vmatprep.subr.mxu0 0.0
    %159 = vmatpush2.msra.mxu0 0.0
    %160 = vmatprep.subr.mxu0 0.0
    %161 = vmatpush2.msra.mxu0 0.0
    %162 = vmatprep.subr.mxu0 0.0
    %163 = vmatpush2.msra.mxu0 0.0
    %164 = vmatprep.subr.mxu0 0.0
    %165 = vmatpush2.msra.mxu0 0.0
    %166 = vmatprep.mubr.f32.mxu0 0.0
    %167 = vmatmul.mubr.f32.gmra.mxu0 %v97
    %v168 = vpop.f32.mrf.mxu0
    %v169 = vadd.f32 %v94, %v168
    %v170 = vpop.f32.mrf.mxu0
    %171 = vmatprep.mubr.f32.mxu0 0.0
    %172 = vmatmul.mubr.f32.gmra.mxu0 %v100
    %v173 = vpop.f32.mrf.mxu0
    %v174 = vadd.f32 %v94, %v173
    %v175 = vpop.f32.mrf.mxu0
    %176 = vdwg.mxu0
    %v177 = vld [vmem:[%s8] sm:$0xff]
    %v178 = vld [vmem:[%s8 + $0x8] sm:$0xff]
    %v179 = vld [vmem:[%s6] sm:$0xff]
    %v180 = vld [vmem:[%s6 + $0x8] sm:$0xff]
    %v181 = vld [vmem:[%s6 + $0x10] sm:$0xff]
    %v182 = vld [vmem:[%s6 + $0x18] sm:$0xff]
    %v183 = vld [vmem:[%s7] sm:$0x1]
    %v185 = vlaneseq
    %v186 = vshrl.u32 %v185, 7
    %v187 = vsub.s32 0, %v186
    %v188 = vrot.slane %v183, %v187
    %v190 = vadd.f32 %v33, %v188
    %v191 = vadd.f32 %v34, %v188
    %194 = vrot.lane.b32.xlu0 %v169, 96
    %v195 = vpop.permute.xlu0 %194
    %196 = vrot.lane.b32.xlu0 %v174, 96
    %v197 = vpop.permute.xlu0 %196
    %vm198 = vcmask 64512
    %v199 = vsel %vm198, %v169, 0
    %v201 = vsel %vm198, %v174, 0
    %v203 = vsel %vm198, %v195, 0
    %v205 = vsel %vm198, %v197, 0
    %207 = vmatprep.subr.mxu0 0.0
    %208 = vmatpush1.xpose.msra.mxu0 0.0
    %209 = vmatprep.subr.mxu0 0.0
    %210 = vmatpush1.xpose.msra.mxu0 0.0
    %211 = vmatprep.subr.mxu0 0.0
    %212 = vmatpush1.xpose.msra.mxu0 0.0
    %213 = vmatprep.subr.mxu0 0.0
    %214 = vmatpush1.xpose.msra.mxu0 0.0
    %215 = vmatprep.subr.mxu0 0.0
    %216 = vmatpush1.xpose.msra.mxu0 0.0
    %217 = vmatprep.subr.mxu0 0.0
    %218 = vmatpush1.xpose.msra.mxu0 0.0
    %219 = vmatprep.subr.mxu0 0.0
    %220 = vmatpush1.xpose.msra.mxu0 0.0
    %221 = vmatprep.subr.mxu0 0.0
    %222 = vmatpush1.xpose.msra.mxu0 0.0
    %223 = vmatprep.subr.mxu0 0.0
    %224 = vmatpush1.xpose.msra.mxu0 0.0
    %225 = vmatprep.subr.mxu0 0.0
    %226 = vmatpush1.xpose.msra.mxu0 0.0
    %227 = vmatprep.subr.mxu0 0.0
    %228 = vmatpush1.xpose.msra.mxu0 0.0
    %229 = vmatprep.subr.mxu0 0.0
    %230 = vmatpush1.xpose.msra.mxu0 0.0
    %231 = vmatprep.subr.mxu0 0.0
    %232 = vmatpush1.xpose.msra.mxu0 0.0
    %233 = vmatprep.subr.mxu0 0.0
    %234 = vmatpush1.xpose.msra.mxu0 0.0
    %235 = vmatprep.subr.mxu0 0.0
    %236 = vmatpush1.xpose.msra.mxu0 %v205
    %237 = vmatprep.subr.mxu0 0.0
    %238 = vmatpush1.xpose.msra.mxu0 %v203
    %239 = vmatprep.subr.mxu0 0.0
    %240 = vmatpush2.xpose.msra.mxu0 0.0
    %241 = vmatprep.subr.mxu0 0.0
    %242 = vmatpush2.xpose.msra.mxu0 0.0
    %243 = vmatprep.subr.mxu0 0.0
    %244 = vmatpush2.xpose.msra.mxu0 0.0
    %245 = vmatprep.subr.mxu0 0.0
    %246 = vmatpush2.xpose.msra.mxu0 0.0
    %247 = vmatprep.subr.mxu0 0.0
    %248 = vmatpush2.xpose.msra.mxu0 0.0
    %249 = vmatprep.subr.mxu0 0.0
    %250 = vmatpush2.xpose.msra.mxu0 0.0
    %251 = vmatprep.subr.mxu0 0.0
    %252 = vmatpush2.xpose.msra.mxu0 0.0
    %253 = vmatprep.subr.mxu0 0.0
    %254 = vmatpush2.xpose.msra.mxu0 0.0
    %255 = vmatprep.subr.mxu0 0.0
    %256 = vmatpush2.xpose.msra.mxu0 0.0
    %257 = vmatprep.subr.mxu0 0.0
    %258 = vmatpush2.xpose.msra.mxu0 0.0
    %259 = vmatprep.subr.mxu0 0.0
    %260 = vmatpush2.xpose.msra.mxu0 0.0
    %261 = vmatprep.subr.mxu0 0.0
    %262 = vmatpush2.xpose.msra.mxu0 0.0
    %263 = vmatprep.subr.mxu0 0.0
    %264 = vmatpush2.xpose.msra.mxu0 0.0
    %265 = vmatprep.subr.mxu0 0.0
    %266 = vmatpush2.xpose.msra.mxu0 0.0
    %267 = vmatprep.subr.mxu0 0.0
    %268 = vmatpush2.xpose.msra.mxu0 0.0
    %269 = vmatprep.subr.mxu0 0.0
    %270 = vmatpush2.xpose.msra.mxu0 0.0
    %271 = vmatprep.mubr.f32.mxu0 0.0
    %272 = vmatmul.mubr.f32.gmra.mxu0 %v199
    %v273 = vpop.f32.mrf.mxu0
    %v274 = vadd.f32 0.0, %v273
    %v275 = vpop.f32.mrf.mxu0
    %276 = vmatprep.mubr.f32.mxu0 0.0
    %277 = vmatmul.mubr.f32.gmra.mxu0 %v201
    %v278 = vpop.f32.mrf.mxu0
    %v279 = vadd.f32 0.0, %v278
    %v280 = vpop.f32.mrf.mxu0
    %281 = vdwg.mxu0
    %v282 = vmul.f32 %v274, 0.35355338
    %v283 = vmul.f32 %v279, 0.35355338
    %v284 = vadd.f32 %v282, %v177
    %v285 = vadd.f32 %v283, %v178
    %vm286 = vcmask 130048
    %v287 = vsel %vm286, %v284, -inf
    %288 = vmax.xlane.f32.xlu0 %v287
    %v289 = vpop.xlane.xlu0 %288
    %v290 = vsel %vm286, %v285, -inf
    %291 = vmax.xlane.f32.xlu0 %v290
    %v292 = vpop.xlane.xlu0 %291
    %v293 = vsub.f32 %v284, %v289
    %v294 = vsub.f32 %v285, %v292
    %v295 = vmul.f32 %v293, 1.442695
    %v296 = vpow.pop %v295
    %v297 = vmul.f32 %v294, 1.442695
    %v298 = vpow.pop %v297
    %v299 = vsel %vm286, %v296, 0.0
    %300 = vadd.xlane.f32.xlu0 %v299
    %v301 = vpop.xlane.xlu0 %300
    %v302 = vsel %vm286, %v298, 0.0
    %303 = vadd.xlane.f32.xlu0 %v302
    %v304 = vpop.xlane.xlu0 %303
    %v305 = vrcp.pop %v301
    %v306 = vrcp.pop %v304
    %v307 = vmul.f32 %v296, %v305
    %v308 = vmul.f32 %v298, %v306
    %309 = vrot.lane.b32.xlu0 %v169, 64
    %v310 = vpop.permute.xlu0 %309
    %311 = vrot.lane.b32.xlu0 %v174, 64
    %v312 = vpop.permute.xlu0 %311
    %v316 = vsel %vm286, %v307, 0
    %v319 = vsel %vm286, %v308, 0
    %321 = vmatprep.subr.mxu0 0.0
    %322 = vmatpush1.msra.mxu0 0.0
    %323 = vmatprep.subr.mxu0 0.0
    %324 = vmatpush1.msra.mxu0 0.0
    %325 = vmatprep.subr.mxu0 0.0
    %326 = vmatpush1.msra.mxu0 0.0
    %327 = vmatprep.subr.mxu0 0.0
    %328 = vmatpush1.msra.mxu0 0.0
    %329 = vmatprep.subr.mxu0 0.0
    %330 = vmatpush1.msra.mxu0 0.0
    %331 = vmatprep.subr.mxu0 0.0
    %332 = vmatpush1.msra.mxu0 0.0
    %333 = vmatprep.subr.mxu0 0.0
    %334 = vmatpush1.msra.mxu0 0.0
    %335 = vmatprep.subr.mxu0 0.0
    %336 = vmatpush1.msra.mxu0 0.0
    %337 = vmatprep.subr.mxu0 0.0
    %338 = vmatpush1.msra.mxu0 0.0
    %339 = vmatprep.subr.mxu0 0.0
    %340 = vmatpush1.msra.mxu0 0.0
    %341 = vmatprep.subr.mxu0 0.0
    %342 = vmatpush1.msra.mxu0 0.0
    %343 = vmatprep.subr.mxu0 0.0
    %344 = vmatpush1.msra.mxu0 0.0
    %345 = vmatprep.subr.mxu0 0.0
    %346 = vmatpush1.msra.mxu0 0.0
    %347 = vmatprep.subr.mxu0 0.0
    %348 = vmatpush1.msra.mxu0 0.0
    %349 = vmatprep.subr.mxu0 0.0
    %350 = vmatpush1.msra.mxu0 %v312
    %351 = vmatprep.subr.mxu0 0.0
    %352 = vmatpush1.msra.mxu0 %v310
    %353 = vmatprep.subr.mxu0 0.0
    %354 = vmatpush2.msra.mxu0 0.0
    %355 = vmatprep.subr.mxu0 0.0
    %356 = vmatpush2.msra.mxu0 0.0
    %357 = vmatprep.subr.mxu0 0.0
    %358 = vmatpush2.msra.mxu0 0.0
    %359 = vmatprep.subr.mxu0 0.0
    %360 = vmatpush2.msra.mxu0 0.0
    %361 = vmatprep.subr.mxu0 0.0
    %362 = vmatpush2.msra.mxu0 0.0
    %363 = vmatprep.subr.mxu0 0.0
    %364 = vmatpush2.msra.mxu0 0.0
    %365 = vmatprep.subr.mxu0 0.0
    %366 = vmatpush2.msra.mxu0 0.0
    %367 = vmatprep.subr.mxu0 0.0
    %368 = vmatpush2.msra.mxu0 0.0
    %369 = vmatprep.subr.mxu0 0.0
    %370 = vmatpush2.msra.mxu0 0.0
    %371 = vmatprep.subr.mxu0 0.0
    %372 = vmatpush2.msra.mxu0 0.0
    %373 = vmatprep.subr.mxu0 0.0
    %374 = vmatpush2.msra.mxu0 0.0
    %375 = vmatprep.subr.mxu0 0.0
    %376 = vmatpush2.msra.mxu0 0.0
    %377 = vmatprep.subr.mxu0 0.0
    %378 = vmatpush2.msra.mxu0 0.0
    %379 = vmatprep.subr.mxu0 0.0
    %380 = vmatpush2.msra.mxu0 0.0
    %381 = vmatprep.subr.mxu0 0.0
    %382 = vmatpush2.msra.mxu0 0.0
    %383 = vmatprep.subr.mxu0 0.0
    %384 = vmatpush2.msra.mxu0 0.0
    %385 = vmatprep.mubr.f32.mxu0 0.0
    %386 = vmatmul.mubr.f32.gmra.mxu0 %v316
    %v387 = vpop.f32.mrf.mxu0
    %v388 = vadd.f32 0.0, %v387
    %v389 = vpop.f32.mrf.mxu0
    %390 = vmatprep.mubr.f32.mxu0 0.0
    %391 = vmatmul.mubr.f32.gmra.mxu0 %v319
    %v392 = vpop.f32.mrf.mxu0
    %v393 = vadd.f32 0.0, %v392
    %v394 = vpop.f32.mrf.mxu0
    %395 = vdwg.mxu0
    %v397 = vsel %vm198, %v388, 0
    %v400 = vsel %vm198, %v393, 0
    %402 = vmatprep.subr.mxu0 0.0
    %403 = vmatpush1.msra.mxu0 0.0
    %404 = vmatprep.subr.mxu0 0.0
    %405 = vmatpush1.msra.mxu0 0.0
    %406 = vmatprep.subr.mxu0 0.0
    %407 = vmatpush1.msra.mxu0 0.0
    %408 = vmatprep.subr.mxu0 0.0
    %409 = vmatpush1.msra.mxu0 0.0
    %410 = vmatprep.subr.mxu0 0.0
    %411 = vmatpush1.msra.mxu0 0.0
    %412 = vmatprep.subr.mxu0 0.0
    %413 = vmatpush1.msra.mxu0 0.0
    %414 = vmatprep.subr.mxu0 0.0
    %415 = vmatpush1.msra.mxu0 0.0
    %416 = vmatprep.subr.mxu0 0.0
    %417 = vmatpush1.msra.mxu0 0.0
    %418 = vmatprep.subr.mxu0 0.0
    %419 = vmatpush1.msra.mxu0 0.0
    %420 = vmatprep.subr.mxu0 0.0
    %421 = vmatpush1.msra.mxu0 0.0
    %422 = vmatprep.subr.mxu0 0.0
    %423 = vmatpush1.msra.mxu0 0.0
    %424 = vmatprep.subr.mxu0 0.0
    %425 = vmatpush1.msra.mxu0 0.0
    %426 = vmatprep.subr.mxu0 0.0
    %427 = vmatpush1.msra.mxu0 0.0
    %428 = vmatprep.subr.mxu0 0.0
    %429 = vmatpush1.msra.mxu0 0.0
    %430 = vmatprep.subr.mxu0 0.0
    %431 = vmatpush1.msra.mxu0 0.0
    %432 = vmatprep.subr.mxu0 0.0
    %433 = vmatpush1.msra.mxu0 %v179
    %434 = vmatprep.subr.mxu0 0.0
    %435 = vmatpush2.msra.mxu0 0.0
    %436 = vmatprep.subr.mxu0 0.0
    %437 = vmatpush2.msra.mxu0 0.0
    %438 = vmatprep.subr.mxu0 0.0
    %439 = vmatpush2.msra.mxu0 0.0
    %440 = vmatprep.subr.mxu0 0.0
    %441 = vmatpush2.msra.mxu0 0.0
    %442 = vmatprep.subr.mxu0 0.0
    %443 = vmatpush2.msra.mxu0 0.0
    %444 = vmatprep.subr.mxu0 0.0
    %445 = vmatpush2.msra.mxu0 0.0
    %446 = vmatprep.subr.mxu0 0.0
    %447 = vmatpush2.msra.mxu0 0.0
    %448 = vmatprep.subr.mxu0 0.0
    %449 = vmatpush2.msra.mxu0 0.0
    %450 = vmatprep.subr.mxu0 0.0
    %451 = vmatpush2.msra.mxu0 0.0
    %452 = vmatprep.subr.mxu0 0.0
    %453 = vmatpush2.msra.mxu0 0.0
    %454 = vmatprep.subr.mxu0 0.0
    %455 = vmatpush2.msra.mxu0 0.0
    %456 = vmatprep.subr.mxu0 0.0
    %457 = vmatpush2.msra.mxu0 0.0
    %458 = vmatprep.subr.mxu0 0.0
    %459 = vmatpush2.msra.mxu0 0.0
    %460 = vmatprep.subr.mxu0 0.0
    %461 = vmatpush2.msra.mxu0 0.0
    %462 = vmatprep.subr.mxu0 0.0
    %463 = vmatpush2.msra.mxu0 0.0
    %464 = vmatprep.subr.mxu0 0.0
    %465 = vmatpush2.msra.mxu0 0.0
    %466 = vmatprep.mubr.f32.mxu0 0.0
    %467 = vmatmul.mubr.f32.gmra.mxu0 %v397
    %v468 = vpop.f32.mrf.mxu0
    %v469 = vadd.f32 0.0, %v468
    %v470 = vpop.f32.mrf.mxu0
    %471 = vmatprep.mubr.f32.mxu0 0.0
    %472 = vmatmul.mubr.f32.gmra.mxu0 %v400
    %v473 = vpop.f32.mrf.mxu0
    %v474 = vadd.f32 0.0, %v473
    %v475 = vpop.f32.mrf.mxu0
    %476 = vdwg.mxu0
    %v477 = vadd.f32 %v190, %v469
    %v478 = vadd.f32 %v191, %v474
    %479 = vrot.lane.b32.xlu0 %v169, 120
    %v480 = vpop.permute.xlu0 %479
    %481 = vrot.lane.b32.xlu0 %v174, 120
    %v482 = vpop.permute.xlu0 %481
    %483 = vrot.lane.b32.xlu0 %v169, 88
    %v484 = vpop.permute.xlu0 %483
    %485 = vrot.lane.b32.xlu0 %v174, 88
    %v486 = vpop.permute.xlu0 %485
    %v487 = vsel %vm198, %v480, 0
    %v489 = vsel %vm198, %v482, 0
    %v491 = vsel %vm198, %v484, 0
    %v493 = vsel %vm198, %v486, 0
    %495 = vmatprep.subr.mxu0 0.0
    %496 = vmatpush1.xpose.msra.mxu0 0.0
    %497 = vmatprep.subr.mxu0 0.0
    %498 = vmatpush1.xpose.msra.mxu0 0.0
    %499 = vmatprep.subr.mxu0 0.0
    %500 = vmatpush1.xpose.msra.mxu0 0.0
    %501 = vmatprep.subr.mxu0 0.0
    %502 = vmatpush1.xpose.msra.mxu0 0.0
    %503 = vmatprep.subr.mxu0 0.0
    %504 = vmatpush1.xpose.msra.mxu0 0.0
    %505 = vmatprep.subr.mxu0 0.0
    %506 = vmatpush1.xpose.msra.mxu0 0.0
    %507 = vmatprep.subr.mxu0 0.0
    %508 = vmatpush1.xpose.msra.mxu0 0.0
    %509 = vmatprep.subr.mxu0 0.0
    %510 = vmatpush1.xpose.msra.mxu0 0.0
    %511 = vmatprep.subr.mxu0 0.0
    %512 = vmatpush1.xpose.msra.mxu0 0.0
    %513 = vmatprep.subr.mxu0 0.0
    %514 = vmatpush1.xpose.msra.mxu0 0.0
    %515 = vmatprep.subr.mxu0 0.0
    %516 = vmatpush1.xpose.msra.mxu0 0.0
    %517 = vmatprep.subr.mxu0 0.0
    %518 = vmatpush1.xpose.msra.mxu0 0.0
    %519 = vmatprep.subr.mxu0 0.0
    %520 = vmatpush1.xpose.msra.mxu0 0.0
    %521 = vmatprep.subr.mxu0 0.0
    %522 = vmatpush1.xpose.msra.mxu0 0.0
    %523 = vmatprep.subr.mxu0 0.0
    %524 = vmatpush1.xpose.msra.mxu0 %v493
    %525 = vmatprep.subr.mxu0 0.0
    %526 = vmatpush1.xpose.msra.mxu0 %v491
    %527 = vmatprep.subr.mxu0 0.0
    %528 = vmatpush2.xpose.msra.mxu0 0.0
    %529 = vmatprep.subr.mxu0 0.0
    %530 = vmatpush2.xpose.msra.mxu0 0.0
    %531 = vmatprep.subr.mxu0 0.0
    %532 = vmatpush2.xpose.msra.mxu0 0.0
    %533 = vmatprep.subr.mxu0 0.0
    %534 = vmatpush2.xpose.msra.mxu0 0.0
    %535 = vmatprep.subr.mxu0 0.0
    %536 = vmatpush2.xpose.msra.mxu0 0.0
    %537 = vmatprep.subr.mxu0 0.0
    %538 = vmatpush2.xpose.msra.mxu0 0.0
    %539 = vmatprep.subr.mxu0 0.0
    %540 = vmatpush2.xpose.msra.mxu0 0.0
    %541 = vmatprep.subr.mxu0 0.0
    %542 = vmatpush2.xpose.msra.mxu0 0.0
    %543 = vmatprep.subr.mxu0 0.0
    %544 = vmatpush2.xpose.msra.mxu0 0.0
    %545 = vmatprep.subr.mxu0 0.0
    %546 = vmatpush2.xpose.msra.mxu0 0.0
    %547 = vmatprep.subr.mxu0 0.0
    %548 = vmatpush2.xpose.msra.mxu0 0.0
    %549 = vmatprep.subr.mxu0 0.0
    %550 = vmatpush2.xpose.msra.mxu0 0.0
    %551 = vmatprep.subr.mxu0 0.0
    %552 = vmatpush2.xpose.msra.mxu0 0.0
    %553 = vmatprep.subr.mxu0 0.0
    %554 = vmatpush2.xpose.msra.mxu0 0.0
    %555 = vmatprep.subr.mxu0 0.0
    %556 = vmatpush2.xpose.msra.mxu0 0.0
    %557 = vmatprep.subr.mxu0 0.0
    %558 = vmatpush2.xpose.msra.mxu0 0.0
    %559 = vmatprep.mubr.f32.mxu0 0.0
    %560 = vmatmul.mubr.f32.gmra.mxu0 %v487
    %v561 = vpop.f32.mrf.mxu0
    %v562 = vadd.f32 0.0, %v561
    %v563 = vpop.f32.mrf.mxu0
    %564 = vmatprep.mubr.f32.mxu0 0.0
    %565 = vmatmul.mubr.f32.gmra.mxu0 %v489
    %v566 = vpop.f32.mrf.mxu0
    %v567 = vadd.f32 0.0, %v566
    %v568 = vpop.f32.mrf.mxu0
    %569 = vdwg.mxu0
    %v570 = vmul.f32 %v562, 0.35355338
    %v571 = vmul.f32 %v567, 0.35355338
    %v572 = vadd.f32 %v570, %v177
    %v573 = vadd.f32 %v571, %v178
    %v574 = vsel %vm286, %v572, -inf
    %575 = vmax.xlane.f32.xlu0 %v574
    %v576 = vpop.xlane.xlu0 %575
    %v577 = vsel %vm286, %v573, -inf
    %578 = vmax.xlane.f32.xlu0 %v577
    %v579 = vpop.xlane.xlu0 %578
    %v580 = vsub.f32 %v572, %v576
    %v581 = vsub.f32 %v573, %v579
    %v582 = vmul.f32 %v580, 1.442695
    %v583 = vpow.pop %v582
    %v584 = vmul.f32 %v581, 1.442695
    %v585 = vpow.pop %v584
    %v586 = vsel %vm286, %v583, 0.0
    %587 = vadd.xlane.f32.xlu0 %v586
    %v588 = vpop.xlane.xlu0 %587
    %v589 = vsel %vm286, %v585, 0.0
    %590 = vadd.xlane.f32.xlu0 %v589
    %v591 = vpop.xlane.xlu0 %590
    %v592 = vrcp.pop %v588
    %v593 = vrcp.pop %v591
    %v594 = vmul.f32 %v583, %v592
    %v595 = vmul.f32 %v585, %v593
    %596 = vrot.lane.b32.xlu0 %v169, 56
    %v597 = vpop.permute.xlu0 %596
    %598 = vrot.lane.b32.xlu0 %v174, 56
    %v599 = vpop.permute.xlu0 %598
    %v603 = vsel %vm286, %v594, 0
    %v606 = vsel %vm286, %v595, 0
    %608 = vmatprep.subr.mxu0 0.0
    %609 = vmatpush1.msra.mxu0 0.0
    %610 = vmatprep.subr.mxu0 0.0
    %611 = vmatpush1.msra.mxu0 0.0
    %612 = vmatprep.subr.mxu0 0.0
    %613 = vmatpush1.msra.mxu0 0.0
    %614 = vmatprep.subr.mxu0 0.0
    %615 = vmatpush1.msra.mxu0 0.0
    %616 = vmatprep.subr.mxu0 0.0
    %617 = vmatpush1.msra.mxu0 0.0
    %618 = vmatprep.subr.mxu0 0.0
    %619 = vmatpush1.msra.mxu0 0.0
    %620 = vmatprep.subr.mxu0 0.0
    %621 = vmatpush1.msra.mxu0 0.0
    %622 = vmatprep.subr.mxu0 0.0
    %623 = vmatpush1.msra.mxu0 0.0
    %624 = vmatprep.subr.mxu0 0.0
    %625 = vmatpush1.msra.mxu0 0.0
    %626 = vmatprep.subr.mxu0 0.0
    %627 = vmatpush1.msra.mxu0 0.0
    %628 = vmatprep.subr.mxu0 0.0
    %629 = vmatpush1.msra.mxu0 0.0
    %630 = vmatprep.subr.mxu0 0.0
    %631 = vmatpush1.msra.mxu0 0.0
    %632 = vmatprep.subr.mxu0 0.0
    %633 = vmatpush1.msra.mxu0 0.0
    %634 = vmatprep.subr.mxu0 0.0
    %635 = vmatpush1.msra.mxu0 0.0
    %636 = vmatprep.subr.mxu0 0.0
    %637 = vmatpush1.msra.mxu0 %v599
    %638 = vmatprep.subr.mxu0 0.0
    %639 = vmatpush1.msra.mxu0 %v597
    %640 = vmatprep.subr.mxu0 0.0
    %641 = vmatpush2.msra.mxu0 0.0
    %642 = vmatprep.subr.mxu0 0.0
    %643 = vmatpush2.msra.mxu0 0.0
    %644 = vmatprep.subr.mxu0 0.0
    %645 = vmatpush2.msra.mxu0 0.0
    %646 = vmatprep.subr.mxu0 0.0
    %647 = vmatpush2.msra.mxu0 0.0
    %648 = vmatprep.subr.mxu0 0.0
    %649 = vmatpush2.msra.mxu0 0.0
    %650 = vmatprep.subr.mxu0 0.0
    %651 = vmatpush2.msra.mxu0 0.0
    %652 = vmatprep.subr.mxu0 0.0
    %653 = vmatpush2.msra.mxu0 0.0
    %654 = vmatprep.subr.mxu0 0.0
    %655 = vmatpush2.msra.mxu0 0.0
    %656 = vmatprep.subr.mxu0 0.0
    %657 = vmatpush2.msra.mxu0 0.0
    %658 = vmatprep.subr.mxu0 0.0
    %659 = vmatpush2.msra.mxu0 0.0
    %660 = vmatprep.subr.mxu0 0.0
    %661 = vmatpush2.msra.mxu0 0.0
    %662 = vmatprep.subr.mxu0 0.0
    %663 = vmatpush2.msra.mxu0 0.0
    %664 = vmatprep.subr.mxu0 0.0
    %665 = vmatpush2.msra.mxu0 0.0
    %666 = vmatprep.subr.mxu0 0.0
    %667 = vmatpush2.msra.mxu0 0.0
    %668 = vmatprep.subr.mxu0 0.0
    %669 = vmatpush2.msra.mxu0 0.0
    %670 = vmatprep.subr.mxu0 0.0
    %671 = vmatpush2.msra.mxu0 0.0
    %672 = vmatprep.mubr.f32.mxu0 0.0
    %673 = vmatmul.mubr.f32.gmra.mxu0 %v603
    %v674 = vpop.f32.mrf.mxu0
    %v675 = vadd.f32 0.0, %v674
    %v676 = vpop.f32.mrf.mxu0
    %677 = vmatprep.mubr.f32.mxu0 0.0
    %678 = vmatmul.mubr.f32.gmra.mxu0 %v606
    %v679 = vpop.f32.mrf.mxu0
    %v680 = vadd.f32 0.0, %v679
    %v681 = vpop.f32.mrf.mxu0
    %682 = vdwg.mxu0
    %v684 = vsel %vm198, %v675, 0
    %v687 = vsel %vm198, %v680, 0
    %689 = vmatprep.subr.mxu0 0.0
    %690 = vmatpush1.msra.mxu0 0.0
    %691 = vmatprep.subr.mxu0 0.0
    %692 = vmatpush1.msra.mxu0 0.0
    %693 = vmatprep.subr.mxu0 0.0
    %694 = vmatpush1.msra.mxu0 0.0
    %695 = vmatprep.subr.mxu0 0.0
    %696 = vmatpush1.msra.mxu0 0.0
    %697 = vmatprep.subr.mxu0 0.0
    %698 = vmatpush1.msra.mxu0 0.0
    %699 = vmatprep.subr.mxu0 0.0
    %700 = vmatpush1.msra.mxu0 0.0
    %701 = vmatprep.subr.mxu0 0.0
    %702 = vmatpush1.msra.mxu0 0.0
    %703 = vmatprep.subr.mxu0 0.0
    %704 = vmatpush1.msra.mxu0 0.0
    %705 = vmatprep.subr.mxu0 0.0
    %706 = vmatpush1.msra.mxu0 0.0
    %707 = vmatprep.subr.mxu0 0.0
    %708 = vmatpush1.msra.mxu0 0.0
    %709 = vmatprep.subr.mxu0 0.0
    %710 = vmatpush1.msra.mxu0 0.0
    %711 = vmatprep.subr.mxu0 0.0
    %712 = vmatpush1.msra.mxu0 0.0
    %713 = vmatprep.subr.mxu0 0.0
    %714 = vmatpush1.msra.mxu0 0.0
    %715 = vmatprep.subr.mxu0 0.0
    %716 = vmatpush1.msra.mxu0 0.0
    %717 = vmatprep.subr.mxu0 0.0
    %718 = vmatpush1.msra.mxu0 0.0
    %719 = vmatprep.subr.mxu0 0.0
    %720 = vmatpush1.msra.mxu0 %v180
    %721 = vmatprep.subr.mxu0 0.0
    %722 = vmatpush2.msra.mxu0 0.0
    %723 = vmatprep.subr.mxu0 0.0
    %724 = vmatpush2.msra.mxu0 0.0
    %725 = vmatprep.subr.mxu0 0.0
    %726 = vmatpush2.msra.mxu0 0.0
    %727 = vmatprep.subr.mxu0 0.0
    %728 = vmatpush2.msra.mxu0 0.0
    %729 = vmatprep.subr.mxu0 0.0
    %730 = vmatpush2.msra.mxu0 0.0
    %731 = vmatprep.subr.mxu0 0.0
    %732 = vmatpush2.msra.mxu0 0.0
    %733 = vmatprep.subr.mxu0 0.0
    %734 = vmatpush2.msra.mxu0 0.0
    %735 = vmatprep.subr.mxu0 0.0
    %736 = vmatpush2.msra.mxu0 0.0
    %737 = vmatprep.subr.mxu0 0.0
    %738 = vmatpush2.msra.mxu0 0.0
    %739 = vmatprep.subr.mxu0 0.0
    %740 = vmatpush2.msra.mxu0 0.0
    %741 = vmatprep.subr.mxu0 0.0
    %742 = vmatpush2.msra.mxu0 0.0
    %743 = vmatprep.subr.mxu0 0.0
    %744 = vmatpush2.msra.mxu0 0.0
    %745 = vmatprep.subr.mxu0 0.0
    %746 = vmatpush2.msra.mxu0 0.0
    %747 = vmatprep.subr.mxu0 0.0
    %748 = vmatpush2.msra.mxu0 0.0
    %749 = vmatprep.subr.mxu0 0.0
    %750 = vmatpush2.msra.mxu0 0.0
    %751 = vmatprep.subr.mxu0 0.0
    %752 = vmatpush2.msra.mxu0 0.0
    %753 = vmatprep.mubr.f32.mxu0 0.0
    %754 = vmatmul.mubr.f32.gmra.mxu0 %v684
    %v755 = vpop.f32.mrf.mxu0
    %v756 = vadd.f32 0.0, %v755
    %v757 = vpop.f32.mrf.mxu0
    %758 = vmatprep.mubr.f32.mxu0 0.0
    %759 = vmatmul.mubr.f32.gmra.mxu0 %v687
    %v760 = vpop.f32.mrf.mxu0
    %v761 = vadd.f32 0.0, %v760
    %v762 = vpop.f32.mrf.mxu0
    %763 = vdwg.mxu0
    %v764 = vadd.f32 %v477, %v756
    %v765 = vadd.f32 %v478, %v761
    %766 = vrot.lane.b32.xlu0 %v169, 112
    %v767 = vpop.permute.xlu0 %766
    %768 = vrot.lane.b32.xlu0 %v174, 112
    %v769 = vpop.permute.xlu0 %768
    %770 = vrot.lane.b32.xlu0 %v169, 80
    %v771 = vpop.permute.xlu0 %770
    %772 = vrot.lane.b32.xlu0 %v174, 80
    %v773 = vpop.permute.xlu0 %772
    %v774 = vsel %vm198, %v767, 0
    %v776 = vsel %vm198, %v769, 0
    %v778 = vsel %vm198, %v771, 0
    %v780 = vsel %vm198, %v773, 0
    %782 = vmatprep.subr.mxu0 0.0
    %783 = vmatpush1.xpose.msra.mxu0 0.0
    %784 = vmatprep.subr.mxu0 0.0
    %785 = vmatpush1.xpose.msra.mxu0 0.0
    %786 = vmatprep.subr.mxu0 0.0
    %787 = vmatpush1.xpose.msra.mxu0 0.0
    %788 = vmatprep.subr.mxu0 0.0
    %789 = vmatpush1.xpose.msra.mxu0 0.0
    %790 = vmatprep.subr.mxu0 0.0
    %791 = vmatpush1.xpose.msra.mxu0 0.0
    %792 = vmatprep.subr.mxu0 0.0
    %793 = vmatpush1.xpose.msra.mxu0 0.0
    %794 = vmatprep.subr.mxu0 0.0
    %795 = vmatpush1.xpose.msra.mxu0 0.0
    %796 = vmatprep.subr.mxu0 0.0
    %797 = vmatpush1.xpose.msra.mxu0 0.0
    %798 = vmatprep.subr.mxu0 0.0
    %799 = vmatpush1.xpose.msra.mxu0 0.0
    %800 = vmatprep.subr.mxu0 0.0
    %801 = vmatpush1.xpose.msra.mxu0 0.0
    %802 = vmatprep.subr.mxu0 0.0
    %803 = vmatpush1.xpose.msra.mxu0 0.0
    %804 = vmatprep.subr.mxu0 0.0
    %805 = vmatpush1.xpose.msra.mxu0 0.0
    %806 = vmatprep.subr.mxu0 0.0
    %807 = vmatpush1.xpose.msra.mxu0 0.0
    %808 = vmatprep.subr.mxu0 0.0
    %809 = vmatpush1.xpose.msra.mxu0 0.0
    %810 = vmatprep.subr.mxu0 0.0
    %811 = vmatpush1.xpose.msra.mxu0 %v780
    %812 = vmatprep.subr.mxu0 0.0
    %813 = vmatpush1.xpose.msra.mxu0 %v778
    %814 = vmatprep.subr.mxu0 0.0
    %815 = vmatpush2.xpose.msra.mxu0 0.0
    %816 = vmatprep.subr.mxu0 0.0
    %817 = vmatpush2.xpose.msra.mxu0 0.0
    %818 = vmatprep.subr.mxu0 0.0
    %819 = vmatpush2.xpose.msra.mxu0 0.0
    %820 = vmatprep.subr.mxu0 0.0
    %821 = vmatpush2.xpose.msra.mxu0 0.0
    %822 = vmatprep.subr.mxu0 0.0
    %823 = vmatpush2.xpose.msra.mxu0 0.0
    %824 = vmatprep.subr.mxu0 0.0
    %825 = vmatpush2.xpose.msra.mxu0 0.0
    %826 = vmatprep.subr.mxu0 0.0
    %827 = vmatpush2.xpose.msra.mxu0 0.0
    %828 = vmatprep.subr.mxu0 0.0
    %829 = vmatpush2.xpose.msra.mxu0 0.0
    %830 = vmatprep.subr.mxu0 0.0
    %831 = vmatpush2.xpose.msra.mxu0 0.0
    %832 = vmatprep.subr.mxu0 0.0
    %833 = vmatpush2.xpose.msra.mxu0 0.0
    %834 = vmatprep.subr.mxu0 0.0
    %835 = vmatpush2.xpose.msra.mxu0 0.0
    %836 = vmatprep.subr.mxu0 0.0
    %837 = vmatpush2.xpose.msra.mxu0 0.0
    %838 = vmatprep.subr.mxu0 0.0
    %839 = vmatpush2.xpose.msra.mxu0 0.0
    %840 = vmatprep.subr.mxu0 0.0
    %841 = vmatpush2.xpose.msra.mxu0 0.0
    %842 = vmatprep.subr.mxu0 0.0
    %843 = vmatpush2.xpose.msra.mxu0 0.0
    %844 = vmatprep.subr.mxu0 0.0
    %845 = vmatpush2.xpose.msra.mxu0 0.0
    %846 = vmatprep.mubr.f32.mxu0 0.0
    %847 = vmatmul.mubr.f32.gmra.mxu0 %v774
    %v848 = vpop.f32.mrf.mxu0
    %v849 = vadd.f32 0.0, %v848
    %v850 = vpop.f32.mrf.mxu0
    %851 = vmatprep.mubr.f32.mxu0 0.0
    %852 = vmatmul.mubr.f32.gmra.mxu0 %v776
    %v853 = vpop.f32.mrf.mxu0
    %v854 = vadd.f32 0.0, %v853
    %v855 = vpop.f32.mrf.mxu0
    %856 = vdwg.mxu0
    %v857 = vmul.f32 %v849, 0.35355338
    %v858 = vmul.f32 %v854, 0.35355338
    %v859 = vadd.f32 %v857, %v177
    %v860 = vadd.f32 %v858, %v178
    %v861 = vsel %vm286, %v859, -inf
    %862 = vmax.xlane.f32.xlu0 %v861
    %v863 = vpop.xlane.xlu0 %862
    %v864 = vsel %vm286, %v860, -inf
    %865 = vmax.xlane.f32.xlu0 %v864
    %v866 = vpop.xlane.xlu0 %865
    %v867 = vsub.f32 %v859, %v863
    %v868 = vsub.f32 %v860, %v866
    %v869 = vmul.f32 %v867, 1.442695
    %v870 = vpow.pop %v869
    %v871 = vmul.f32 %v868, 1.442695
    %v872 = vpow.pop %v871
    %v873 = vsel %vm286, %v870, 0.0
    %874 = vadd.xlane.f32.xlu0 %v873
    %v875 = vpop.xlane.xlu0 %874
    %v876 = vsel %vm286, %v872, 0.0
    %877 = vadd.xlane.f32.xlu0 %v876
    %v878 = vpop.xlane.xlu0 %877
    %v879 = vrcp.pop %v875
    %v880 = vrcp.pop %v878
    %v881 = vmul.f32 %v870, %v879
    %v882 = vmul.f32 %v872, %v880
    %883 = vrot.lane.b32.xlu0 %v169, 48
    %v884 = vpop.permute.xlu0 %883
    %885 = vrot.lane.b32.xlu0 %v174, 48
    %v886 = vpop.permute.xlu0 %885
    %v890 = vsel %vm286, %v881, 0
    %v893 = vsel %vm286, %v882, 0
    %895 = vmatprep.subr.mxu0 0.0
    %896 = vmatpush1.msra.mxu0 0.0
    %897 = vmatprep.subr.mxu0 0.0
    %898 = vmatpush1.msra.mxu0 0.0
    %899 = vmatprep.subr.mxu0 0.0
    %900 = vmatpush1.msra.mxu0 0.0
    %901 = vmatprep.subr.mxu0 0.0
    %902 = vmatpush1.msra.mxu0 0.0
    %903 = vmatprep.subr.mxu0 0.0
    %904 = vmatpush1.msra.mxu0 0.0
    %905 = vmatprep.subr.mxu0 0.0
    %906 = vmatpush1.msra.mxu0 0.0
    %907 = vmatprep.subr.mxu0 0.0
    %908 = vmatpush1.msra.mxu0 0.0
    %909 = vmatprep.subr.mxu0 0.0
    %910 = vmatpush1.msra.mxu0 0.0
    %911 = vmatprep.subr.mxu0 0.0
    %912 = vmatpush1.msra.mxu0 0.0
    %913 = vmatprep.subr.mxu0 0.0
    %914 = vmatpush1.msra.mxu0 0.0
    %915 = vmatprep.subr.mxu0 0.0
    %916 = vmatpush1.msra.mxu0 0.0
    %917 = vmatprep.subr.mxu0 0.0
    %918 = vmatpush1.msra.mxu0 0.0
    %919 = vmatprep.subr.mxu0 0.0
    %920 = vmatpush1.msra.mxu0 0.0
    %921 = vmatprep.subr.mxu0 0.0
    %922 = vmatpush1.msra.mxu0 0.0
    %923 = vmatprep.subr.mxu0 0.0
    %924 = vmatpush1.msra.mxu0 %v886
    %925 = vmatprep.subr.mxu0 0.0
    %926 = vmatpush1.msra.mxu0 %v884
    %927 = vmatprep.subr.mxu0 0.0
    %928 = vmatpush2.msra.mxu0 0.0
    %929 = vmatprep.subr.mxu0 0.0
    %930 = vmatpush2.msra.mxu0 0.0
    %931 = vmatprep.subr.mxu0 0.0
    %932 = vmatpush2.msra.mxu0 0.0
    %933 = vmatprep.subr.mxu0 0.0
    %934 = vmatpush2.msra.mxu0 0.0
    %935 = vmatprep.subr.mxu0 0.0
    %936 = vmatpush2.msra.mxu0 0.0
    %937 = vmatprep.subr.mxu0 0.0
    %938 = vmatpush2.msra.mxu0 0.0
    %939 = vmatprep.subr.mxu0 0.0
    %940 = vmatpush2.msra.mxu0 0.0
    %941 = vmatprep.subr.mxu0 0.0
    %942 = vmatpush2.msra.mxu0 0.0
    %943 = vmatprep.subr.mxu0 0.0
    %944 = vmatpush2.msra.mxu0 0.0
    %945 = vmatprep.subr.mxu0 0.0
    %946 = vmatpush2.msra.mxu0 0.0
    %947 = vmatprep.subr.mxu0 0.0
    %948 = vmatpush2.msra.mxu0 0.0
    %949 = vmatprep.subr.mxu0 0.0
    %950 = vmatpush2.msra.mxu0 0.0
    %951 = vmatprep.subr.mxu0 0.0
    %952 = vmatpush2.msra.mxu0 0.0
    %953 = vmatprep.subr.mxu0 0.0
    %954 = vmatpush2.msra.mxu0 0.0
    %955 = vmatprep.subr.mxu0 0.0
    %956 = vmatpush2.msra.mxu0 0.0
    %957 = vmatprep.subr.mxu0 0.0
    %958 = vmatpush2.msra.mxu0 0.0
    %959 = vmatprep.mubr.f32.mxu0 0.0
    %960 = vmatmul.mubr.f32.gmra.mxu0 %v890
    %v961 = vpop.f32.mrf.mxu0
    %v962 = vadd.f32 0.0, %v961
    %v963 = vpop.f32.mrf.mxu0
    %964 = vmatprep.mubr.f32.mxu0 0.0
    %965 = vmatmul.mubr.f32.gmra.mxu0 %v893
    %v966 = vpop.f32.mrf.mxu0
    %v967 = vadd.f32 0.0, %v966
    %v968 = vpop.f32.mrf.mxu0
    %969 = vdwg.mxu0
    %v971 = vsel %vm198, %v962, 0
    %v974 = vsel %vm198, %v967, 0
    %976 = vmatprep.subr.mxu0 0.0
    %977 = vmatpush1.msra.mxu0 0.0
    %978 = vmatprep.subr.mxu0 0.0
    %979 = vmatpush1.msra.mxu0 0.0
    %980 = vmatprep.subr.mxu0 0.0
    %981 = vmatpush1.msra.mxu0 0.0
    %982 = vmatprep.subr.mxu0 0.0
    %983 = vmatpush1.msra.mxu0 0.0
    %984 = vmatprep.subr.mxu0 0.0
    %985 = vmatpush1.msra.mxu0 0.0
    %986 = vmatprep.subr.mxu0 0.0
    %987 = vmatpush1.msra.mxu0 0.0
    %988 = vmatprep.subr.mxu0 0.0
    %989 = vmatpush1.msra.mxu0 0.0
    %990 = vmatprep.subr.mxu0 0.0
    %991 = vmatpush1.msra.mxu0 0.0
    %992 = vmatprep.subr.mxu0 0.0
    %993 = vmatpush1.msra.mxu0 0.0
    %994 = vmatprep.subr.mxu0 0.0
    %995 = vmatpush1.msra.mxu0 0.0
    %996 = vmatprep.subr.mxu0 0.0
    %997 = vmatpush1.msra.mxu0 0.0
    %998 = vmatprep.subr.mxu0 0.0
    %999 = vmatpush1.msra.mxu0 0.0
    %1000 = vmatprep.subr.mxu0 0.0
    %1001 = vmatpush1.msra.mxu0 0.0
    %1002 = vmatprep.subr.mxu0 0.0
    %1003 = vmatpush1.msra.mxu0 0.0
    %1004 = vmatprep.subr.mxu0 0.0
    %1005 = vmatpush1.msra.mxu0 0.0
    %1006 = vmatprep.subr.mxu0 0.0
    %1007 = vmatpush1.msra.mxu0 %v181
    %1008 = vmatprep.subr.mxu0 0.0
    %1009 = vmatpush2.msra.mxu0 0.0
    %1010 = vmatprep.subr.mxu0 0.0
    %1011 = vmatpush2.msra.mxu0 0.0
    %1012 = vmatprep.subr.mxu0 0.0
    %1013 = vmatpush2.msra.mxu0 0.0
    %1014 = vmatprep.subr.mxu0 0.0
    %1015 = vmatpush2.msra.mxu0 0.0
    %1016 = vmatprep.subr.mxu0 0.0
    %1017 = vmatpush2.msra.mxu0 0.0
    %1018 = vmatprep.subr.mxu0 0.0
    %1019 = vmatpush2.msra.mxu0 0.0
    %1020 = vmatprep.subr.mxu0 0.0
    %1021 = vmatpush2.msra.mxu0 0.0
    %1022 = vmatprep.subr.mxu0 0.0
    %1023 = vmatpush2.msra.mxu0 0.0
    %1024 = vmatprep.subr.mxu0 0.0
    %1025 = vmatpush2.msra.mxu0 0.0
    %1026 = vmatprep.subr.mxu0 0.0
    %1027 = vmatpush2.msra.mxu0 0.0
    %1028 = vmatprep.subr.mxu0 0.0
    %1029 = vmatpush2.msra.mxu0 0.0
    %1030 = vmatprep.subr.mxu0 0.0
    %1031 = vmatpush2.msra.mxu0 0.0
    %1032 = vmatprep.subr.mxu0 0.0
    %1033 = vmatpush2.msra.mxu0 0.0
    %1034 = vmatprep.subr.mxu0 0.0
    %1035 = vmatpush2.msra.mxu0 0.0
    %1036 = vmatprep.subr.mxu0 0.0
    %1037 = vmatpush2.msra.mxu0 0.0
    %1038 = vmatprep.subr.mxu0 0.0
    %1039 = vmatpush2.msra.mxu0 0.0
    %1040 = vmatprep.mubr.f32.mxu0 0.0
    %1041 = vmatmul.mubr.f32.gmra.mxu0 %v971
    %v1042 = vpop.f32.mrf.mxu0
    %v1043 = vadd.f32 0.0, %v1042
    %v1044 = vpop.f32.mrf.mxu0
    %1045 = vmatprep.mubr.f32.mxu0 0.0
    %1046 = vmatmul.mubr.f32.gmra.mxu0 %v974
    %v1047 = vpop.f32.mrf.mxu0
    %v1048 = vadd.f32 0.0, %v1047
    %v1049 = vpop.f32.mrf.mxu0
    %1050 = vdwg.mxu0
    %v1051 = vadd.f32 %v764, %v1043
    %v1052 = vadd.f32 %v765, %v1048
    %1053 = vrot.lane.b32.xlu0 %v169, 104
    %v1054 = vpop.permute.xlu0 %1053
    %1055 = vrot.lane.b32.xlu0 %v174, 104
    %v1056 = vpop.permute.xlu0 %1055
    %1057 = vrot.lane.b32.xlu0 %v169, 72
    %v1058 = vpop.permute.xlu0 %1057
    %1059 = vrot.lane.b32.xlu0 %v174, 72
    %v1060 = vpop.permute.xlu0 %1059
    %v1061 = vsel %vm198, %v1054, 0
    %v1063 = vsel %vm198, %v1056, 0
    %v1065 = vsel %vm198, %v1058, 0
    %v1067 = vsel %vm198, %v1060, 0
    %1069 = vmatprep.subr.mxu0 0.0
    %1070 = vmatpush1.xpose.msra.mxu0 0.0
    %1071 = vmatprep.subr.mxu0 0.0
    %1072 = vmatpush1.xpose.msra.mxu0 0.0
    %1073 = vmatprep.subr.mxu0 0.0
    %1074 = vmatpush1.xpose.msra.mxu0 0.0
    %1075 = vmatprep.subr.mxu0 0.0
    %1076 = vmatpush1.xpose.msra.mxu0 0.0
    %1077 = vmatprep.subr.mxu0 0.0
    %1078 = vmatpush1.xpose.msra.mxu0 0.0
    %1079 = vmatprep.subr.mxu0 0.0
    %1080 = vmatpush1.xpose.msra.mxu0 0.0
    %1081 = vmatprep.subr.mxu0 0.0
    %1082 = vmatpush1.xpose.msra.mxu0 0.0
    %1083 = vmatprep.subr.mxu0 0.0
    %1084 = vmatpush1.xpose.msra.mxu0 0.0
    %1085 = vmatprep.subr.mxu0 0.0
    %1086 = vmatpush1.xpose.msra.mxu0 0.0
    %1087 = vmatprep.subr.mxu0 0.0
    %1088 = vmatpush1.xpose.msra.mxu0 0.0
    %1089 = vmatprep.subr.mxu0 0.0
    %1090 = vmatpush1.xpose.msra.mxu0 0.0
    %1091 = vmatprep.subr.mxu0 0.0
    %1092 = vmatpush1.xpose.msra.mxu0 0.0
    %1093 = vmatprep.subr.mxu0 0.0
    %1094 = vmatpush1.xpose.msra.mxu0 0.0
    %1095 = vmatprep.subr.mxu0 0.0
    %1096 = vmatpush1.xpose.msra.mxu0 0.0
    %1097 = vmatprep.subr.mxu0 0.0
    %1098 = vmatpush1.xpose.msra.mxu0 %v1067
    %1099 = vmatprep.subr.mxu0 0.0
    %1100 = vmatpush1.xpose.msra.mxu0 %v1065
    %1101 = vmatprep.subr.mxu0 0.0
    %1102 = vmatpush2.xpose.msra.mxu0 0.0
    %1103 = vmatprep.subr.mxu0 0.0
    %1104 = vmatpush2.xpose.msra.mxu0 0.0
    %1105 = vmatprep.subr.mxu0 0.0
    %1106 = vmatpush2.xpose.msra.mxu0 0.0
    %1107 = vmatprep.subr.mxu0 0.0
    %1108 = vmatpush2.xpose.msra.mxu0 0.0
    %1109 = vmatprep.subr.mxu0 0.0
    %1110 = vmatpush2.xpose.msra.mxu0 0.0
    %1111 = vmatprep.subr.mxu0 0.0
    %1112 = vmatpush2.xpose.msra.mxu0 0.0
    %1113 = vmatprep.subr.mxu0 0.0
    %1114 = vmatpush2.xpose.msra.mxu0 0.0
    %1115 = vmatprep.subr.mxu0 0.0
    %1116 = vmatpush2.xpose.msra.mxu0 0.0
    %1117 = vmatprep.subr.mxu0 0.0
    %1118 = vmatpush2.xpose.msra.mxu0 0.0
    %1119 = vmatprep.subr.mxu0 0.0
    %1120 = vmatpush2.xpose.msra.mxu0 0.0
    %1121 = vmatprep.subr.mxu0 0.0
    %1122 = vmatpush2.xpose.msra.mxu0 0.0
    %1123 = vmatprep.subr.mxu0 0.0
    %1124 = vmatpush2.xpose.msra.mxu0 0.0
    %1125 = vmatprep.subr.mxu0 0.0
    %1126 = vmatpush2.xpose.msra.mxu0 0.0
    %1127 = vmatprep.subr.mxu0 0.0
    %1128 = vmatpush2.xpose.msra.mxu0 0.0
    %1129 = vmatprep.subr.mxu0 0.0
    %1130 = vmatpush2.xpose.msra.mxu0 0.0
    %1131 = vmatprep.subr.mxu0 0.0
    %1132 = vmatpush2.xpose.msra.mxu0 0.0
    %1133 = vmatprep.mubr.f32.mxu0 0.0
    %1134 = vmatmul.mubr.f32.gmra.mxu0 %v1061
    %v1135 = vpop.f32.mrf.mxu0
    %v1136 = vadd.f32 0.0, %v1135
    %v1137 = vpop.f32.mrf.mxu0
    %1138 = vmatprep.mubr.f32.mxu0 0.0
    %1139 = vmatmul.mubr.f32.gmra.mxu0 %v1063
    %v1140 = vpop.f32.mrf.mxu0
    %v1141 = vadd.f32 0.0, %v1140
    %v1142 = vpop.f32.mrf.mxu0
    %1143 = vdwg.mxu0
    %v1144 = vmul.f32 %v1136, 0.35355338
    %v1145 = vmul.f32 %v1141, 0.35355338
    %v1146 = vadd.f32 %v1144, %v177
    %v1147 = vadd.f32 %v1145, %v178
    %v1148 = vsel %vm286, %v1146, -inf
    %1149 = vmax.xlane.f32.xlu0 %v1148
    %v1150 = vpop.xlane.xlu0 %1149
    %v1151 = vsel %vm286, %v1147, -inf
    %1152 = vmax.xlane.f32.xlu0 %v1151
    %v1153 = vpop.xlane.xlu0 %1152
    %v1154 = vsub.f32 %v1146, %v1150
    %v1155 = vsub.f32 %v1147, %v1153
    %v1156 = vmul.f32 %v1154, 1.442695
    %v1157 = vpow.pop %v1156
    %v1158 = vmul.f32 %v1155, 1.442695
    %v1159 = vpow.pop %v1158
    %v1160 = vsel %vm286, %v1157, 0.0
    %1161 = vadd.xlane.f32.xlu0 %v1160
    %v1162 = vpop.xlane.xlu0 %1161
    %v1163 = vsel %vm286, %v1159, 0.0
    %1164 = vadd.xlane.f32.xlu0 %v1163
    %v1165 = vpop.xlane.xlu0 %1164
    %v1166 = vrcp.pop %v1162
    %v1167 = vrcp.pop %v1165
    %v1168 = vmul.f32 %v1157, %v1166
    %v1169 = vmul.f32 %v1159, %v1167
    %1170 = vrot.lane.b32.xlu0 %v169, 40
    %v1171 = vpop.permute.xlu0 %1170
    %1172 = vrot.lane.b32.xlu0 %v174, 40
    %v1173 = vpop.permute.xlu0 %1172
    %v1177 = vsel %vm286, %v1168, 0
    %v1180 = vsel %vm286, %v1169, 0
    %1182 = vmatprep.subr.mxu0 0.0
    %1183 = vmatpush1.msra.mxu0 0.0
    %1184 = vmatprep.subr.mxu0 0.0
    %1185 = vmatpush1.msra.mxu0 0.0
    %1186 = vmatprep.subr.mxu0 0.0
    %1187 = vmatpush1.msra.mxu0 0.0
    %1188 = vmatprep.subr.mxu0 0.0
    %1189 = vmatpush1.msra.mxu0 0.0
    %1190 = vmatprep.subr.mxu0 0.0
    %1191 = vmatpush1.msra.mxu0 0.0
    %1192 = vmatprep.subr.mxu0 0.0
    %1193 = vmatpush1.msra.mxu0 0.0
    %1194 = vmatprep.subr.mxu0 0.0
    %1195 = vmatpush1.msra.mxu0 0.0
    %1196 = vmatprep.subr.mxu0 0.0
    %1197 = vmatpush1.msra.mxu0 0.0
    %1198 = vmatprep.subr.mxu0 0.0
    %1199 = vmatpush1.msra.mxu0 0.0
    %1200 = vmatprep.subr.mxu0 0.0
    %1201 = vmatpush1.msra.mxu0 0.0
    %1202 = vmatprep.subr.mxu0 0.0
    %1203 = vmatpush1.msra.mxu0 0.0
    %1204 = vmatprep.subr.mxu0 0.0
    %1205 = vmatpush1.msra.mxu0 0.0
    %1206 = vmatprep.subr.mxu0 0.0
    %1207 = vmatpush1.msra.mxu0 0.0
    %1208 = vmatprep.subr.mxu0 0.0
    %1209 = vmatpush1.msra.mxu0 0.0
    %1210 = vmatprep.subr.mxu0 0.0
    %1211 = vmatpush1.msra.mxu0 %v1173
    %1212 = vmatprep.subr.mxu0 0.0
    %1213 = vmatpush1.msra.mxu0 %v1171
    %1214 = vmatprep.subr.mxu0 0.0
    %1215 = vmatpush2.msra.mxu0 0.0
    %1216 = vmatprep.subr.mxu0 0.0
    %1217 = vmatpush2.msra.mxu0 0.0
    %1218 = vmatprep.subr.mxu0 0.0
    %1219 = vmatpush2.msra.mxu0 0.0
    %1220 = vmatprep.subr.mxu0 0.0
    %1221 = vmatpush2.msra.mxu0 0.0
    %1222 = vmatprep.subr.mxu0 0.0
    %1223 = vmatpush2.msra.mxu0 0.0
    %1224 = vmatprep.subr.mxu0 0.0
    %1225 = vmatpush2.msra.mxu0 0.0
    %1226 = vmatprep.subr.mxu0 0.0
    %1227 = vmatpush2.msra.mxu0 0.0
    %1228 = vmatprep.subr.mxu0 0.0
    %1229 = vmatpush2.msra.mxu0 0.0
    %1230 = vmatprep.subr.mxu0 0.0
    %1231 = vmatpush2.msra.mxu0 0.0
    %1232 = vmatprep.subr.mxu0 0.0
    %1233 = vmatpush2.msra.mxu0 0.0
    %1234 = vmatprep.subr.mxu0 0.0
    %1235 = vmatpush2.msra.mxu0 0.0
    %1236 = vmatprep.subr.mxu0 0.0
    %1237 = vmatpush2.msra.mxu0 0.0
    %1238 = vmatprep.subr.mxu0 0.0
    %1239 = vmatpush2.msra.mxu0 0.0
    %1240 = vmatprep.subr.mxu0 0.0
    %1241 = vmatpush2.msra.mxu0 0.0
    %1242 = vmatprep.subr.mxu0 0.0
    %1243 = vmatpush2.msra.mxu0 0.0
    %1244 = vmatprep.subr.mxu0 0.0
    %1245 = vmatpush2.msra.mxu0 0.0
    %1246 = vmatprep.mubr.f32.mxu0 0.0
    %1247 = vmatmul.mubr.f32.gmra.mxu0 %v1177
    %v1248 = vpop.f32.mrf.mxu0
    %v1249 = vadd.f32 0.0, %v1248
    %v1250 = vpop.f32.mrf.mxu0
    %1251 = vmatprep.mubr.f32.mxu0 0.0
    %1252 = vmatmul.mubr.f32.gmra.mxu0 %v1180
    %v1253 = vpop.f32.mrf.mxu0
    %v1254 = vadd.f32 0.0, %v1253
    %v1255 = vpop.f32.mrf.mxu0
    %1256 = vdwg.mxu0
    %v1258 = vsel %vm198, %v1249, 0
    %v1261 = vsel %vm198, %v1254, 0
    %1263 = vmatprep.subr.mxu0 0.0
    %1264 = vmatpush1.msra.mxu0 0.0
    %1265 = vmatprep.subr.mxu0 0.0
    %1266 = vmatpush1.msra.mxu0 0.0
    %1267 = vmatprep.subr.mxu0 0.0
    %1268 = vmatpush1.msra.mxu0 0.0
    %1269 = vmatprep.subr.mxu0 0.0
    %1270 = vmatpush1.msra.mxu0 0.0
    %1271 = vmatprep.subr.mxu0 0.0
    %1272 = vmatpush1.msra.mxu0 0.0
    %1273 = vmatprep.subr.mxu0 0.0
    %1274 = vmatpush1.msra.mxu0 0.0
    %1275 = vmatprep.subr.mxu0 0.0
    %1276 = vmatpush1.msra.mxu0 0.0
    %1277 = vmatprep.subr.mxu0 0.0
    %1278 = vmatpush1.msra.mxu0 0.0
    %1279 = vmatprep.subr.mxu0 0.0
    %1280 = vmatpush1.msra.mxu0 0.0
    %1281 = vmatprep.subr.mxu0 0.0
    %1282 = vmatpush1.msra.mxu0 0.0
    %1283 = vmatprep.subr.mxu0 0.0
    %1284 = vmatpush1.msra.mxu0 0.0
    %1285 = vmatprep.subr.mxu0 0.0
    %1286 = vmatpush1.msra.mxu0 0.0
    %1287 = vmatprep.subr.mxu0 0.0
    %1288 = vmatpush1.msra.mxu0 0.0
    %1289 = vmatprep.subr.mxu0 0.0
    %1290 = vmatpush1.msra.mxu0 0.0
    %1291 = vmatprep.subr.mxu0 0.0
    %1292 = vmatpush1.msra.mxu0 0.0
    %1293 = vmatprep.subr.mxu0 0.0
    %1294 = vmatpush1.msra.mxu0 %v182
    %1295 = vmatprep.subr.mxu0 0.0
    %1296 = vmatpush2.msra.mxu0 0.0
    %1297 = vmatprep.subr.mxu0 0.0
    %1298 = vmatpush2.msra.mxu0 0.0
    %1299 = vmatprep.subr.mxu0 0.0
    %1300 = vmatpush2.msra.mxu0 0.0
    %1301 = vmatprep.subr.mxu0 0.0
    %1302 = vmatpush2.msra.mxu0 0.0
    %1303 = vmatprep.subr.mxu0 0.0
    %1304 = vmatpush2.msra.mxu0 0.0
    %1305 = vmatprep.subr.mxu0 0.0
    %1306 = vmatpush2.msra.mxu0 0.0
    %1307 = vmatprep.subr.mxu0 0.0
    %1308 = vmatpush2.msra.mxu0 0.0
    %1309 = vmatprep.subr.mxu0 0.0
    %1310 = vmatpush2.msra.mxu0 0.0
    %1311 = vmatprep.subr.mxu0 0.0
    %1312 = vmatpush2.msra.mxu0 0.0
    %1313 = vmatprep.subr.mxu0 0.0
    %1314 = vmatpush2.msra.mxu0 0.0
    %1315 = vmatprep.subr.mxu0 0.0
    %1316 = vmatpush2.msra.mxu0 0.0
    %1317 = vmatprep.subr.mxu0 0.0
    %1318 = vmatpush2.msra.mxu0 0.0
    %1319 = vmatprep.subr.mxu0 0.0
    %1320 = vmatpush2.msra.mxu0 0.0
    %1321 = vmatprep.subr.mxu0 0.0
    %1322 = vmatpush2.msra.mxu0 0.0
    %1323 = vmatprep.subr.mxu0 0.0
    %1324 = vmatpush2.msra.mxu0 0.0
    %1325 = vmatprep.subr.mxu0 0.0
    %1326 = vmatpush2.msra.mxu0 0.0
    %1327 = vmatprep.mubr.f32.mxu0 0.0
    %1328 = vmatmul.mubr.f32.gmra.mxu0 %v1258
    %v1329 = vpop.f32.mrf.mxu0
    %v1330 = vadd.f32 0.0, %v1329
    %v1331 = vpop.f32.mrf.mxu0
    %1332 = vmatprep.mubr.f32.mxu0 0.0
    %1333 = vmatmul.mubr.f32.gmra.mxu0 %v1261
    %v1334 = vpop.f32.mrf.mxu0
    %v1335 = vadd.f32 0.0, %v1334
    %v1336 = vpop.f32.mrf.mxu0
    %1337 = vdwg.mxu0
    %v1338 = vadd.f32 %v1051, %v1330
    %v1339 = vadd.f32 %v1052, %v1335
    %1340 = vst.msk [vmem:[#allocation2] sm:$0xff] %vm35, %v1338
    %1341 = vst.msk [vmem:[#allocation2 + $0x8] sm:$0xff] %vm35, %v1339
    // Predicated region
    $region38: #{mhsa_forward.1} parent=1 // pred_check
      _
    $region39: #{mhsa_forward.1} parent=1 // pred_check_branch
      %1343 = sbr.rel (0) target = $region41
    $region40: #{mhsa_forward.1} parent=1 // pred_region
      %s1345 = ssub.s32 256, 256
      %1346 = vsyncadd [#allocation3], %s1345
      %s1347 = sshll.u32 [#allocation2], 4
      %s1348 = int_to_ptr.vmem [resolvable:$true] %s1347
      %1353 = dma.vmem_to_hbm [thread:$0]  %s1348, 256, %s9, [#allocation3], 128, 128, 8
    $region41: #{mhsa_forward.1} parent=1 // pred_fallthru
      _
    // Predicated region
    $region42: #{mhsa_forward.1} parent=1 // pred_check
      _
    $region43: #{mhsa_forward.1} parent=1 // pred_check_branch
      %1355 = sbr.rel (0) target = $region45
    $region44: #{mhsa_forward.1} parent=1 // pred_region
      %1356 = dma.done [#allocation3], 256
    $region45: #{mhsa_forward.1} parent=1 // pred_fallthru
      _
    %1357 = vsyncpa [#allocation3], 1

</llo_original>
